<compile_context>
chip_gen: v7x
topology: tpu7x:2x2x1
jax: 0.10.0
libtpu: 0.0.40
codegen_flags: <defaults>
</compile_context>

<pallas_src>
import functools

import jax
import jax.numpy as jnp
from jax.experimental import pallas as pl
from jax.experimental.pallas import tpu as pltpu

EPS = 1e-6


def _swap_leading(x):
    """[A, B, minor] -> [B, A, minor]; lane (minor) dim untouched."""
    if hasattr(pltpu, "einshape"):
        return pltpu.einshape("abd->bad", x)
    return jnp.swapaxes(x, 0, 1)


def t5_block_kernel(x_full_ref, x_q_ref, mask_ref, bias_ref,
                    wq_ref, wkv_ref, wo_ref, wi_ref, wff_ref,
                    ln1_ref, ln2_ref, out_ref,
                    *, num_heads, head_dim, bf16_exp):
    H, dh = num_heads, head_dim
    D = H * dh

    x_full = x_full_ref[0].astype(jnp.float32)   # [S, D]  all key rows for this batch element
    x_q = x_q_ref[0].astype(jnp.float32)         # [TQ, D] query-tile rows
    S = x_full.shape[0]
    TQ = x_q.shape[0]

    ln1 = ln1_ref[...].astype(jnp.float32)       # [1, D]

    def rmsnorm(v, w):
        var = jnp.mean(v * v, axis=-1, keepdims=True)
        return v * jax.lax.rsqrt(var + EPS) * w

    xn_full = rmsnorm(x_full, ln1).astype(jnp.bfloat16)    # [S, D]  bf16 for MXU
    xn_q = rmsnorm(x_q, ln1).astype(jnp.bfloat16)          # [TQ, D]

    # Q projection on the query tile; fused K/V projection on all key rows (T5: no 1/sqrt(d)).
    q_flat = jnp.dot(xn_q, wq_ref[...], preferred_element_type=jnp.float32)       # [TQ, D]
    kv_flat = jnp.dot(xn_full, wkv_ref[...], preferred_element_type=jnp.float32)  # [S, 2D]

    # Head split: one reshape + one relayout per operand (no H-way lane-slice loop).
    q = _swap_leading(q_flat.astype(jnp.bfloat16).reshape(TQ, H, dh))              # [H, TQ, dh]
    k = _swap_leading(kv_flat[:, :D].astype(jnp.bfloat16).reshape(S, H, dh))       # [H, S, dh]
    v = _swap_leading(kv_flat[:, D:].astype(jnp.bfloat16).reshape(S, H, dh))       # [H, S, dh]

    # ---- Batched multi-head attention (heads batched on the leading axis) ----
    scores = jnp.einsum("hqd,hkd->hqk", q, k,
                        preferred_element_type=jnp.float32)                        # [H, TQ, S] f32
    scores = scores + bias_ref[...].astype(jnp.float32)      # broadcast add, no (bias+mask) temp
    scores = scores + mask_ref[0].astype(jnp.float32)        # [1, S] additive mask broadcast
    scores = scores - jnp.max(scores, axis=-1, keepdims=True)
    if bf16_exp:
        p = jnp.exp(scores.astype(jnp.bfloat16))             # bf16 EUP on v6e/v7x
    else:
        p = jnp.exp(scores).astype(jnp.bfloat16)             # f32 EUP on v5e
    denom = jnp.sum(p.astype(jnp.float32), axis=-1, keepdims=True)                 # [H, TQ, 1] f32
    ctx = jnp.einsum("hqk,hkd->hqd", p, v,
                     preferred_element_type=jnp.float32)                           # [H, TQ, dh]
    # Fold the softmax normalization after P.V: scale H*TQ*dh values, not H*TQ*S.
    ctx = ctx * pl.reciprocal(denom, approx=True)

    # Head merge: one relayout + reshape, then the output projection.
    ctx_flat = _swap_leading(ctx).reshape(TQ, D).astype(jnp.bfloat16)              # [TQ, D]
    attn_out = jnp.dot(ctx_flat, wo_ref[...], preferred_element_type=jnp.float32)
    h1 = x_q + attn_out                                                            # residual (f32)

    # ---- Feed-forward (dense-relu-dense) ----
    ln2 = ln2_ref[...].astype(jnp.float32)
    h1n = rmsnorm(h1, ln2).astype(jnp.bfloat16)
    ff = jnp.dot(h1n, wi_ref[...], preferred_element_type=jnp.float32)             # [TQ, F]
    ff = jnp.maximum(ff, 0.0).astype(jnp.bfloat16)                                 # ReLU in f32
    ff = jnp.dot(ff, wff_ref[...], preferred_element_type=jnp.float32)             # [TQ, D]

    out_ref[0] = (h1 + ff).astype(out_ref.dtype)


def prepare_t5_block_params(params, *, num_heads, head_dim):
    """One-time weight preprocessing (hoisted out of the per-call path)."""
    H, dh = num_heads, head_dim
    D = H * dh
    # Fuse K/V into one [D, 2D] matrix; column order [kv, head, dh] so the in-kernel
    # reshape/slice reproduces the reference per-head split exactly.
    w_kv = jnp.stack([params["wk"].reshape(D, H, dh),
                      params["wv"].reshape(D, H, dh)], axis=1).reshape(D, 2 * D)
    return {
        "wq": params["wq"].astype(jnp.bfloat16),
        "wkv": w_kv.astype(jnp.bfloat16),
        "wo": params["wo"].astype(jnp.bfloat16),
        "wi": params["wi"].astype(jnp.bfloat16),
        "wff": params["wff"].astype(jnp.bfloat16),
        "ln1": params["ln1"].astype(jnp.float32),
        "ln2": params["ln2"].astype(jnp.float32),
    }


def _pick_query_tile(S):
    # Lane/sublane-friendly query tile: multiples of 128 (256 preferred) at real sizes,
    # the full sequence when it is small.
    if S <= 512:
        return S
    for tq in (512, 256, 128):
        if S % tq == 0:
            return tq
    return S


def _supports_bf16_exp():
    # v6e / v7x have a bf16 EUP; v5e (and older) do not.
    try:
        kind = jax.devices()[0].device_kind.lower()
    except Exception:
        return False
    return any(tag in kind for tag in ("v6", "v7", "7x"))


def t5_block_forward(hidden_states, attention_mask, position_bias, prepared,
                     *, num_heads, head_dim):
    """Mirrors CheckpointWrapper.forward with use_checkpoint=False.

    hidden_states  : [B, S, D] float32
    attention_mask : [B, S]    additive float mask (0 / -1e9)
    position_bias  : [H, S, S] float32
    prepared       : output of prepare_t5_block_params (bf16 weights, f32 layernorm scales)
    Returns a tuple (hidden_states_out, position_bias), like a T5 block.
    """
    B, S, D = hidden_states.shape
    H, dh = num_heads, head_dim
    assert D == H * dh
    F = prepared["wi"].shape[1]

    TQ = _pick_query_tile(S)
    NQ = S // TQ

    bias_bf16 = position_bias.astype(jnp.bfloat16)   # halve the largest input block
    mask3 = attention_mask.reshape(B, 1, S)          # sublane-clean (1,1,S) blocks

    kernel = functools.partial(t5_block_kernel, num_heads=H, head_dim=dh,
                               bf16_exp=_supports_bf16_exp())

    def _spec(shape, index_map, *, single_buffer=False):
        if single_buffer:
            try:
                return pl.BlockSpec(shape, index_map, pipeline_mode=pl.Buffered(1))
            except (TypeError, ValueError, AttributeError):
                pass
        return pl.BlockSpec(shape, index_map)

    def const(shape):
        zeros = (0,) * len(shape)
        return _spec(shape, lambda b, qi: zeros, single_buffer=True)

    # position_bias index is constant only when there is a single query tile.
    bias_spec = _spec((H, TQ, S), lambda b, qi: (0, qi, 0), single_buffer=(NQ == 1))

    grid_spec = pltpu.PrefetchScalarGridSpec(
        num_scalar_prefetch=0,
        grid=(B, NQ),
        in_specs=[
            pl.BlockSpec((1, S, D), lambda b, qi: (b, 0, 0)),    # hidden_states (all keys)
            pl.BlockSpec((1, TQ, D), lambda b, qi: (b, qi, 0)),  # hidden_states (query tile)
            pl.BlockSpec((1, 1, S), lambda b, qi: (b, 0, 0)),    # attention_mask
            bias_spec,                                           # position_bias (bf16)
            const((D, D)),                                       # Wq   (bf16)
            const((D, 2 * D)),                                   # fused Wkv (bf16)
            const((D, D)),                                       # Wo   (bf16)
            const((D, F)),                                       # Wi   (bf16)
            const((F, D)),                                       # Wff  (bf16)
            const((1, D)),                                       # RMSNorm 1 weight (f32)
            const((1, D)),                                       # RMSNorm 2 weight (f32)
        ],
        out_specs=pl.BlockSpec((1, TQ, D), lambda b, qi: (b, qi, 0)),
    )

    # Scoped-VMEM budget, capped by the actual chip generation's capacity.
    BF16, F32 = 2, 4
    weight_bytes = BF16 * (prepared["wq"].size + prepared["wkv"].size + prepared["wo"].size
                           + prepared["wi"].size + prepared["wff"].size) + F32 * 2 * D
    bias_bytes = (1 if NQ == 1 else 2) * BF16 * H * TQ * S
    io_bytes = 2 * F32 * (S * D + 2 * TQ * D + S)                       # double-buffered IO blocks
    inter_bytes = F32 * (3 * S * D + 6 * TQ * D + 3 * H * TQ * S
                         + 2 * H * S * dh + 2 * TQ * F)
    want = weight_bytes + bias_bytes + io_bytes + inter_bytes
    try:
        vmem_cap = int(pltpu.get_tpu_info().vmem_capacity_bytes)
    except Exception:
        vmem_cap = 64 * 2 ** 20          # conservative: v7x per-TensorCore capacity
    vmem_limit = int(min(vmem_cap - 8 * 2 ** 20, max(32 * 2 ** 20, want)))

    out = pl.pallas_call(
        kernel,
        out_shape=jax.ShapeDtypeStruct((B, S, D), hidden_states.dtype),
        grid_spec=grid_spec,
        compiler_params=pltpu.CompilerParams(
            dimension_semantics=("parallel", "parallel"),
            vmem_limit_bytes=vmem_limit,
        ),
    )(hidden_states, hidden_states, mask3, bias_bf16,
      prepared["wq"], prepared["wkv"], prepared["wo"], prepared["wi"], prepared["wff"],
      prepared["ln1"], prepared["ln2"])

    # T5Block returns (hidden_states, position_bias, ...); CheckpointWrapper passes it through.
    return (out, position_bias)


def reference_forward(hidden_states, attention_mask, position_bias, params,
                      *, num_heads, head_dim):
    x = hidden_states.astype(jnp.float32)
    B, S, D = x.shape
    H, dh = num_heads, head_dim

    var = jnp.mean(x * x, axis=-1, keepdims=True)
    xn = x * jax.lax.rsqrt(var + EPS) * params["ln1"][0]
    q = xn @ params["wq"]
    k = xn @ params["wk"]
    v = xn @ params["wv"]
    q = q.reshape(B, S, H, dh).transpose(0, 2, 1, 3)
    k = k.reshape(B, S, H, dh).transpose(0, 2, 1, 3)
    v = v.reshape(B, S, H, dh).transpose(0, 2, 1, 3)
    scores = jnp.einsum("bhqd,bhkd->bhqk", q, k)
    scores = scores + position_bias[None] + attention_mask[:, None, None, :]
    p = jax.nn.softmax(scores, axis=-1)
    ctx = jnp.einsum("bhqk,bhkd->bhqd", p, v).transpose(0, 2, 1, 3).reshape(B, S, D)
    h1 = x + ctx @ params["wo"]
    var2 = jnp.mean(h1 * h1, axis=-1, keepdims=True)
    h1n = h1 * jax.lax.rsqrt(var2 + EPS) * params["ln2"][0]
    ff = jnp.maximum(h1n @ params["wi"], 0.0) @ params["wff"]
    return h1 + ff


if __name__ == "__main__":
    B, S, D = 2, 8, 32
    H, dh = 4, 8
    F = 64

    key = jax.random.PRNGKey(0)
    ks = jax.random.split(key, 12)

    params = {
        "wq": jax.random.normal(ks[0], (D, D), jnp.float32) * 0.05,
        "wk": jax.random.normal(ks[1], (D, D), jnp.float32) * 0.05,
        "wv": jax.random.normal(ks[2], (D, D), jnp.float32) * 0.05,
        "wo": jax.random.normal(ks[3], (D, D), jnp.float32) * 0.05,
        "wi": jax.random.normal(ks[4], (D, F), jnp.float32) * 0.05,
        "wff": jax.random.normal(ks[5], (F, D), jnp.float32) * 0.05,
        "ln1": jnp.ones((1, D), jnp.float32),
        "ln2": jnp.ones((1, D), jnp.float32),
    }
    # One-time weight preprocessing (fused KV + bf16 casts), hoisted out of the forward path.
    prepared = prepare_t5_block_params(params, num_heads=H, head_dim=dh)

    hidden_states = jax.random.normal(ks[6], (B, S, D), jnp.float32)
    position_bias = jax.random.normal(ks[7], (H, S, S), jnp.float32) * 0.1
    # Additive mask: batch 0 fully visible, batch 1 masks the last two key positions.
    mask01 = jnp.ones((B, S), jnp.float32).at[1, -2:].set(0.0)
    attention_mask = (1.0 - mask01) * -1e9

    out, pos_bias_out = t5_block_forward(
        hidden_states, attention_mask, position_bias, prepared,
        num_heads=H, head_dim=dh)
    out = jax.block_until_ready(out)

    ref = reference_forward(hidden_states, attention_mask, position_bias, params,
                            num_heads=H, head_dim=dh)
    assert out.shape == (B, S, D)
    # bf16 matmul inputs/bias + approx reciprocal => relaxed tolerance vs. the f32 reference.
    max_err = float(jnp.max(jnp.abs(out - ref)))
    assert max_err < 5e-2, max_err

    print("KERNEL_OK")
</pallas_src>

<mosaic_0001>
module attributes {stable_mosaic.version = 11 : i64} {
  func.func @t5_block_kernel(%arg0: i32, %arg1: i32, %arg2: memref<1x8x32xf32, #tpu.memory_space<vmem>>, %arg3: memref<1x8x32xf32, #tpu.memory_space<vmem>>, %arg4: memref<1x1x8xf32, #tpu.memory_space<vmem>>, %arg5: memref<4x8x8xbf16, #tpu.memory_space<vmem>>, %arg6: memref<32x32xbf16, #tpu.memory_space<vmem>>, %arg7: memref<32x64xbf16, #tpu.memory_space<vmem>>, %arg8: memref<32x32xbf16, #tpu.memory_space<vmem>>, %arg9: memref<32x64xbf16, #tpu.memory_space<vmem>>, %arg10: memref<64x32xbf16, #tpu.memory_space<vmem>>, %arg11: memref<1x32xf32, #tpu.memory_space<vmem>>, %arg12: memref<1x32xf32, #tpu.memory_space<vmem>>, %arg13: memref<1x8x32xf32, #tpu.memory_space<vmem>>) attributes {dimension_semantics = [#tpu.dimension_semantics<parallel>, #tpu.dimension_semantics<parallel>], iteration_bounds = array<i64: 2, 1>, scalar_prefetch = 0 : i64, scratch_operands = 0 : i64, tpu.core_type = #tpu.core_type<tc>, window_params = [{transform_indices = @transform_0, window_bounds = array<i64: 1, 8, 32>}, {transform_indices = @transform_1, window_bounds = array<i64: 1, 8, 32>}, {transform_indices = @transform_2, window_bounds = array<i64: 1, 1, 8>}, {pipeline_mode = #tpu.pipeline_mode<synchronous>, transform_indices = @transform_3, window_bounds = array<i64: 4, 8, 8>}, {pipeline_mode = #tpu.pipeline_mode<synchronous>, transform_indices = @transform_4, window_bounds = array<i64: 32, 32>}, {pipeline_mode = #tpu.pipeline_mode<synchronous>, transform_indices = @transform_5, window_bounds = array<i64: 32, 64>}, {pipeline_mode = #tpu.pipeline_mode<synchronous>, transform_indices = @transform_6, window_bounds = array<i64: 32, 32>}, {pipeline_mode = #tpu.pipeline_mode<synchronous>, transform_indices = @transform_7, window_bounds = array<i64: 32, 64>}, {pipeline_mode = #tpu.pipeline_mode<synchronous>, transform_indices = @transform_8, window_bounds = array<i64: 64, 32>}, {pipeline_mode = #tpu.pipeline_mode<synchronous>, transform_indices = @transform_9, window_bounds = array<i64: 1, 32>}, {pipeline_mode = #tpu.pipeline_mode<synchronous>, transform_indices = @transform_10, window_bounds = array<i64: 1, 32>}, {transform_indices = @transform_11, window_bounds = array<i64: 1, 8, 32>}]} {
    %c0 = arith.constant 0 : index
    %c0_0 = arith.constant 0 : index
    %c0_1 = arith.constant 0 : index
    %0 = vector.load %arg2[%c0, %c0_0, %c0_1] : memref<1x8x32xf32, #tpu.memory_space<vmem>>, vector<1x8x32xf32>
    %1 = vector.shape_cast %0 : vector<1x8x32xf32> to vector<8x32xf32>
    %c0_2 = arith.constant 0 : index
    %c0_3 = arith.constant 0 : index
    %c0_4 = arith.constant 0 : index
    %2 = vector.load %arg3[%c0_2, %c0_3, %c0_4] : memref<1x8x32xf32, #tpu.memory_space<vmem>>, vector<1x8x32xf32>
    %3 = vector.shape_cast %2 : vector<1x8x32xf32> to vector<8x32xf32>
    %c0_5 = arith.constant 0 : index
    %c0_6 = arith.constant 0 : index
    %4 = vector.load %arg11[%c0_5, %c0_6] : memref<1x32xf32, #tpu.memory_space<vmem>>, vector<1x32xf32>
    %5 = arith.mulf %1, %1 : vector<8x32xf32>
    %cst = arith.constant dense<0.000000e+00> : vector<8xf32>
    %6 = vector.multi_reduction <add>, %5, %cst [1] : vector<8x32xf32> to vector<8xf32>
    %7 = vector.shape_cast %6 : vector<8xf32> to vector<8x1xf32>
    %cst_7 = arith.constant 3.200000e+01 : f32
    %8 = vector.broadcast %cst_7 : f32 to vector<8x1xf32>
    %9 = arith.divf %7, %8 : vector<8x1xf32>
    %cst_8 = arith.constant 9.99999997E-7 : f32
    %10 = vector.broadcast %cst_8 : f32 to vector<8x1xf32>
    %11 = arith.addf %9, %10 : vector<8x1xf32>
    %12 = math.rsqrt %11 : vector<8x1xf32>
    %13 = vector.broadcast %12 : vector<8x1xf32> to vector<8x32xf32>
    %14 = arith.mulf %1, %13 : vector<8x32xf32>
    %15 = vector.broadcast %4 : vector<1x32xf32> to vector<8x32xf32>
    %16 = arith.mulf %14, %15 : vector<8x32xf32>
    %17 = arith.truncf %16 : vector<8x32xf32> to vector<8x32xbf16>
    %18 = arith.mulf %3, %3 : vector<8x32xf32>
    %cst_9 = arith.constant dense<0.000000e+00> : vector<8xf32>
    %19 = vector.multi_reduction <add>, %18, %cst_9 [1] : vector<8x32xf32> to vector<8xf32>
    %20 = vector.shape_cast %19 : vector<8xf32> to vector<8x1xf32>
    %cst_10 = arith.constant 3.200000e+01 : f32
    %21 = vector.broadcast %cst_10 : f32 to vector<8x1xf32>
    %22 = arith.divf %20, %21 : vector<8x1xf32>
    %cst_11 = arith.constant 9.99999997E-7 : f32
    %23 = vector.broadcast %cst_11 : f32 to vector<8x1xf32>
    %24 = arith.addf %22, %23 : vector<8x1xf32>
    %25 = math.rsqrt %24 : vector<8x1xf32>
    %26 = vector.broadcast %25 : vector<8x1xf32> to vector<8x32xf32>
    %27 = arith.mulf %3, %26 : vector<8x32xf32>
    %28 = vector.broadcast %4 : vector<1x32xf32> to vector<8x32xf32>
    %29 = arith.mulf %27, %28 : vector<8x32xf32>
    %30 = arith.truncf %29 : vector<8x32xf32> to vector<8x32xbf16>
    %c0_12 = arith.constant 0 : index
    %c0_13 = arith.constant 0 : index
    %31 = vector.load %arg6[%c0_12, %c0_13] : memref<32x32xbf16, #tpu.memory_space<vmem>>, vector<32x32xbf16>
    %cst_14 = arith.constant dense<0.000000e+00> : vector<8x32xf32>
    %32 = tpu.matmul %30, %31, %cst_14 {dimension_numbers = #tpu.dot_dimension_numbers<[1], [0], [0], [1], [0, 0, 1, 1], [], []>} : vector<8x32xbf16>, vector<32x32xbf16>, vector<8x32xf32> -> vector<8x32xf32>
    %c0_15 = arith.constant 0 : index
    %c0_16 = arith.constant 0 : index
    %33 = vector.load %arg7[%c0_15, %c0_16] : memref<32x64xbf16, #tpu.memory_space<vmem>>, vector<32x64xbf16>
    %cst_17 = arith.constant dense<0.000000e+00> : vector<8x64xf32>
    %34 = tpu.matmul %17, %33, %cst_17 {dimension_numbers = #tpu.dot_dimension_numbers<[1], [0], [0], [1], [0, 0, 1, 1], [], []>} : vector<8x32xbf16>, vector<32x64xbf16>, vector<8x64xf32> -> vector<8x64xf32>
    %35 = arith.truncf %32 : vector<8x32xf32> to vector<8x32xbf16>
    %36 = vector.shape_cast %35 : vector<8x32xbf16> to vector<8x4x8xbf16>
    %37 = tpu.transpose %36, [1, 0, 2] : vector<8x4x8xbf16> -> vector<4x8x8xbf16>
    %38 = vector.extract_strided_slice %34 {offsets = [0, 0], sizes = [8, 32], strides = [1, 1]} : vector<8x64xf32> to vector<8x32xf32>
    %39 = arith.truncf %38 : vector<8x32xf32> to vector<8x32xbf16>
    %40 = vector.shape_cast %39 : vector<8x32xbf16> to vector<8x4x8xbf16>
    %41 = tpu.transpose %40, [1, 0, 2] : vector<8x4x8xbf16> -> vector<4x8x8xbf16>
    %42 = vector.extract_strided_slice %34 {offsets = [0, 32], sizes = [8, 32], strides = [1, 1]} : vector<8x64xf32> to vector<8x32xf32>
    %43 = arith.truncf %42 : vector<8x32xf32> to vector<8x32xbf16>
    %44 = vector.shape_cast %43 : vector<8x32xbf16> to vector<8x4x8xbf16>
    %45 = tpu.transpose %44, [1, 0, 2] : vector<8x4x8xbf16> -> vector<4x8x8xbf16>
    "tpu.trace_start"() <{level = 10 : i32, message = "hqd,hkd->hqk"}> : () -> ()
    %cst_18 = arith.constant dense<0.000000e+00> : vector<4x8x8xf32>
    %46 = tpu.matmul %37, %41, %cst_18 {dimension_numbers = #tpu.dot_dimension_numbers<[2], [2], [1], [1], [0, 0, 0, 1, 1, 1], [0], [0]>} : vector<4x8x8xbf16>, vector<4x8x8xbf16>, vector<4x8x8xf32> -> vector<4x8x8xf32>
    "tpu.trace_stop"() : () -> ()
    %c0_19 = arith.constant 0 : index
    %c0_20 = arith.constant 0 : index
    %c0_21 = arith.constant 0 : index
    %47 = vector.load %arg5[%c0_19, %c0_20, %c0_21] : memref<4x8x8xbf16, #tpu.memory_space<vmem>>, vector<4x8x8xbf16>
    %48 = arith.extf %47 : vector<4x8x8xbf16> to vector<4x8x8xf32>
    %49 = arith.addf %46, %48 : vector<4x8x8xf32>
    %c0_22 = arith.constant 0 : index
    %c0_23 = arith.constant 0 : index
    %c0_24 = arith.constant 0 : index
    %50 = vector.load %arg4[%c0_22, %c0_23, %c0_24] : memref<1x1x8xf32, #tpu.memory_space<vmem>>, vector<1x1x8xf32>
    %51 = vector.shape_cast %50 : vector<1x1x8xf32> to vector<1x8xf32>
    %52 = vector.shape_cast %51 : vector<1x8xf32> to vector<1x1x8xf32>
    %53 = vector.broadcast %52 : vector<1x1x8xf32> to vector<4x8x8xf32>
    %54 = arith.addf %49, %53 : vector<4x8x8xf32>
    %cst_25 = arith.constant dense<0xFF800000> : vector<4x8xf32>
    %55 = vector.multi_reduction <maximumf>, %54, %cst_25 [2] : vector<4x8x8xf32> to vector<4x8xf32>
    %56 = vector.shape_cast %55 : vector<4x8xf32> to vector<4x8x1xf32>
    %57 = vector.broadcast %56 : vector<4x8x1xf32> to vector<4x8x8xf32>
    %58 = arith.subf %54, %57 : vector<4x8x8xf32>
    %59 = math.exp %58 : vector<4x8x8xf32>
    %60 = arith.truncf %59 : vector<4x8x8xf32> to vector<4x8x8xbf16>
    %61 = arith.extf %60 : vector<4x8x8xbf16> to vector<4x8x8xf32>
    %cst_26 = arith.constant dense<0.000000e+00> : vector<4x8xf32>
    %62 = vector.multi_reduction <add>, %61, %cst_26 [2] : vector<4x8x8xf32> to vector<4x8xf32>
    %63 = vector.shape_cast %62 : vector<4x8xf32> to vector<4x8x1xf32>
    "tpu.trace_start"() <{level = 10 : i32, message = "hqk,hkd->hqd"}> : () -> ()
    %cst_27 = arith.constant dense<0.000000e+00> : vector<4x8x8xf32>
    %64 = tpu.matmul %60, %45, %cst_27 {dimension_numbers = #tpu.dot_dimension_numbers<[2], [1], [1], [2], [0, 0, 0, 1, 1, 2], [0], [0]>} : vector<4x8x8xbf16>, vector<4x8x8xbf16>, vector<4x8x8xf32> -> vector<4x8x8xf32>
    "tpu.trace_stop"() : () -> ()
    %65 = tpu.reciprocal %63 {approx = true} : vector<4x8x1xf32> -> vector<4x8x1xf32>
    %66 = vector.broadcast %65 : vector<4x8x1xf32> to vector<4x8x8xf32>
    %67 = arith.mulf %64, %66 : vector<4x8x8xf32>
    %68 = tpu.transpose %67, [1, 0, 2] : vector<4x8x8xf32> -> vector<8x4x8xf32>
    %69 = vector.shape_cast %68 : vector<8x4x8xf32> to vector<8x32xf32>
    %70 = arith.truncf %69 : vector<8x32xf32> to vector<8x32xbf16>
    %c0_28 = arith.constant 0 : index
    %c0_29 = arith.constant 0 : index
    %71 = vector.load %arg8[%c0_28, %c0_29] : memref<32x32xbf16, #tpu.memory_space<vmem>>, vector<32x32xbf16>
    %cst_30 = arith.constant dense<0.000000e+00> : vector<8x32xf32>
    %72 = tpu.matmul %70, %71, %cst_30 {dimension_numbers = #tpu.dot_dimension_numbers<[1], [0], [0], [1], [0, 0, 1, 1], [], []>} : vector<8x32xbf16>, vector<32x32xbf16>, vector<8x32xf32> -> vector<8x32xf32>
    %73 = arith.addf %3, %72 : vector<8x32xf32>
    %c0_31 = arith.constant 0 : index
    %c0_32 = arith.constant 0 : index
    %74 = vector.load %arg12[%c0_31, %c0_32] : memref<1x32xf32, #tpu.memory_space<vmem>>, vector<1x32xf32>
    %75 = arith.mulf %73, %73 : vector<8x32xf32>
    %cst_33 = arith.constant dense<0.000000e+00> : vector<8xf32>
    %76 = vector.multi_reduction <add>, %75, %cst_33 [1] : vector<8x32xf32> to vector<8xf32>
    %77 = vector.shape_cast %76 : vector<8xf32> to vector<8x1xf32>
    %cst_34 = arith.constant 3.200000e+01 : f32
    %78 = vector.broadcast %cst_34 : f32 to vector<8x1xf32>
    %79 = arith.divf %77, %78 : vector<8x1xf32>
    %cst_35 = arith.constant 9.99999997E-7 : f32
    %80 = vector.broadcast %cst_35 : f32 to vector<8x1xf32>
    %81 = arith.addf %79, %80 : vector<8x1xf32>
    %82 = math.rsqrt %81 : vector<8x1xf32>
    %83 = vector.broadcast %82 : vector<8x1xf32> to vector<8x32xf32>
    %84 = arith.mulf %73, %83 : vector<8x32xf32>
    %85 = vector.broadcast %74 : vector<1x32xf32> to vector<8x32xf32>
    %86 = arith.mulf %84, %85 : vector<8x32xf32>
    %87 = arith.truncf %86 : vector<8x32xf32> to vector<8x32xbf16>
    %c0_36 = arith.constant 0 : index
    %c0_37 = arith.constant 0 : index
    %88 = vector.load %arg9[%c0_36, %c0_37] : memref<32x64xbf16, #tpu.memory_space<vmem>>, vector<32x64xbf16>
    %cst_38 = arith.constant dense<0.000000e+00> : vector<8x64xf32>
    %89 = tpu.matmul %87, %88, %cst_38 {dimension_numbers = #tpu.dot_dimension_numbers<[1], [0], [0], [1], [0, 0, 1, 1], [], []>} : vector<8x32xbf16>, vector<32x64xbf16>, vector<8x64xf32> -> vector<8x64xf32>
    %cst_39 = arith.constant 0.000000e+00 : f32
    %90 = vector.broadcast %cst_39 : f32 to vector<8x64xf32>
    %91 = arith.maximumf %89, %90 : vector<8x64xf32>
    %92 = arith.truncf %91 : vector<8x64xf32> to vector<8x64xbf16>
    %c0_40 = arith.constant 0 : index
    %c0_41 = arith.constant 0 : index
    %93 = vector.load %arg10[%c0_40, %c0_41] : memref<64x32xbf16, #tpu.memory_space<vmem>>, vector<64x32xbf16>
    %cst_42 = arith.constant dense<0.000000e+00> : vector<8x32xf32>
    %94 = tpu.matmul %92, %93, %cst_42 {dimension_numbers = #tpu.dot_dimension_numbers<[1], [0], [0], [1], [0, 0, 1, 1], [], []>} : vector<8x64xbf16>, vector<64x32xbf16>, vector<8x32xf32> -> vector<8x32xf32>
    %95 = arith.addf %73, %94 : vector<8x32xf32>
    %c0_43 = arith.constant 0 : index
    %c0_44 = arith.constant 0 : index
    %c0_45 = arith.constant 0 : index
    %96 = vector.load %arg13[%c0_43, %c0_44, %c0_45] : memref<1x8x32xf32, #tpu.memory_space<vmem>>, vector<1x8x32xf32>
    %97 = vector.shape_cast %96 : vector<1x8x32xf32> to vector<8x32xf32>
    %98 = vector.shape_cast %95 : vector<8x32xf32> to vector<1x8x32xf32>
    tpu.vector_store %arg13[%c0_43, %c0_44, %c0_45], %98 {strides = array<i32>} : memref<1x8x32xf32, #tpu.memory_space<vmem>>, vector<1x8x32xf32>,
    return
  }
  func.func @transform_0(%arg0: i32, %arg1: i32) -> (i32, i32, i32) {
    %c0_i32 = arith.constant 0 : i32
    %c0_i32_0 = arith.constant 0 : i32
    %c0_i32_1 = arith.constant 0 : i32
    return %arg0, %c0_i32, %c0_i32_0 : i32, i32, i32
  }
  func.func @transform_1(%arg0: i32, %arg1: i32) -> (i32, i32, i32) {
    %c0_i32 = arith.constant 0 : i32
    %c0_i32_0 = arith.constant 0 : i32
    return %arg0, %arg1, %c0_i32 : i32, i32, i32
  }
  func.func @transform_2(%arg0: i32, %arg1: i32) -> (i32, i32, i32) {
    %c0_i32 = arith.constant 0 : i32
    %c0_i32_0 = arith.constant 0 : i32
    %c0_i32_1 = arith.constant 0 : i32
    return %arg0, %c0_i32, %c0_i32_0 : i32, i32, i32
  }
  func.func @transform_3(%arg0: i32, %arg1: i32) -> (i32, i32, i32) {
    %c0_i32 = arith.constant 0 : i32
    %c0_i32_0 = arith.constant 0 : i32
    %c0_i32_1 = arith.constant 0 : i32
    return %c0_i32, %arg1, %c0_i32_0 : i32, i32, i32
  }
  func.func @transform_4(%arg0: i32, %arg1: i32) -> (i32, i32) {
    %c0_i32 = arith.constant 0 : i32
    %c0_i32_0 = arith.constant 0 : i32
    %c0_i32_1 = arith.constant 0 : i32
    return %c0_i32, %c0_i32_0 : i32, i32
  }
  func.func @transform_5(%arg0: i32, %arg1: i32) -> (i32, i32) {
    %c0_i32 = arith.constant 0 : i32
    %c0_i32_0 = arith.constant 0 : i32
    %c0_i32_1 = arith.constant 0 : i32
    return %c0_i32, %c0_i32_0 : i32, i32
  }
  func.func @transform_6(%arg0: i32, %arg1: i32) -> (i32, i32) {
    %c0_i32 = arith.constant 0 : i32
    %c0_i32_0 = arith.constant 0 : i32
    %c0_i32_1 = arith.constant 0 : i32
    return %c0_i32, %c0_i32_0 : i32, i32
  }
  func.func @transform_7(%arg0: i32, %arg1: i32) -> (i32, i32) {
    %c0_i32 = arith.constant 0 : i32
    %c0_i32_0 = arith.constant 0 : i32
    %c0_i32_1 = arith.constant 0 : i32
    return %c0_i32, %c0_i32_0 : i32, i32
  }
  func.func @transform_8(%arg0: i32, %arg1: i32) -> (i32, i32) {
    %c0_i32 = arith.constant 0 : i32
    %c0_i32_0 = arith.constant 0 : i32
    %c0_i32_1 = arith.constant 0 : i32
    return %c0_i32, %c0_i32_0 : i32, i32
  }
  func.func @transform_9(%arg0: i32, %arg1: i32) -> (i32, i32) {
    %c0_i32 = arith.constant 0 : i32
    %c0_i32_0 = arith.constant 0 : i32
    %c0_i32_1 = arith.constant 0 : i32
    return %c0_i32, %c0_i32_0 : i32, i32
  }
  func.func @transform_10(%arg0: i32, %arg1: i32) -> (i32, i32) {
    %c0_i32 = arith.constant 0 : i32
    %c0_i32_0 = arith.constant 0 : i32
    %c0_i32_1 = arith.constant 0 : i32
    return %c0_i32, %c0_i32_0 : i32, i32
  }
  func.func @transform_11(%arg0: i32, %arg1: i32) -> (i32, i32, i32) {
    %c0_i32 = arith.constant 0 : i32
    %c0_i32_0 = arith.constant 0 : i32
    return %arg0, %arg1, %c0_i32 : i32, i32, i32
  }
}

</mosaic_0001>

<llo_original>
// kernel: tpu_custom_call.1
$region0: #{tpu_custom_call.1}
  #allocation0 [shape = 'u32[]', space=smem, size = 0x4, offset = 0x4, fixed_abs, tag = 'smem constant byte address 0x4 - core index']
  #allocation1 [shape = 'u32[144,128]{1,0:T(1,128)}', space=vmem, size = 0x12000, scoped, tag = 'internal scratch']
  %s0 = inlined_call_operand.vmem [shape: f32[2,8,32], index: 0, kind: input, shape index: {}]
  %s1 = inlined_call_operand.vmem [shape: f32[2,8,32], index: 1, kind: input, shape index: {}]
  %s2 = inlined_call_operand.vmem [shape: f32[2,1,8], index: 2, kind: input, shape index: {}]
  %s3 = inlined_call_operand.vmem [shape: bf16[4,8,8], index: 3, kind: input, shape index: {}]
  %s4 = inlined_call_operand.hbm [shape: bf16[32,32], index: 4, kind: input, shape index: {}]
  %s5 = inlined_call_operand.hbm [shape: bf16[32,64], index: 5, kind: input, shape index: {}]
  %s6 = inlined_call_operand.hbm [shape: bf16[32,32], index: 6, kind: input, shape index: {}]
  %s7 = inlined_call_operand.hbm [shape: bf16[32,64], index: 7, kind: input, shape index: {}]
  %s8 = inlined_call_operand.vmem [shape: bf16[64,32], index: 8, kind: input, shape index: {}]
  %s9 = inlined_call_operand.vmem [shape: f32[1,32], index: 9, kind: input, shape index: {}]
  %s10 = inlined_call_operand.vmem [shape: f32[1,32], index: 10, kind: input, shape index: {}]
  %s11 = inlined_call_operand.hbm [shape: f32[2,8,32], index: 11, kind: output, shape index: {}]
  %s12 = sld [smem:[#allocation0]]
  $region93: #{tpu_custom_call.1} parent=0
    _
  %s14 = ssub.s32 1, %s12
  %s15 = scalar_select 0, %s14, %s12
  $region1: #{tpu_custom_call.1} parent=0
    #allocation2 [shape = 'u8[8192]{0}', space=vmem, size = 0x2000, scoped, tag = 'input window, operand 4, single buffered']
    #allocation3 [shape = 's32[2]{0}', space=sflag, size = 0x8, scoped, tag = 'scoped memory for tpu_custom_call.1']
    #allocation4 [shape = 's32[2]{0}', space=sflag, size = 0x8, scoped, tag = 'scoped memory for tpu_custom_call.1']
    #allocation5 [shape = 'u8[8192]{0}', space=vmem, size = 0x2000, scoped, tag = 'input window, operand 5, single buffered']
    #allocation6 [shape = 's32[1]{0}', space=sflag, size = 0x4, scoped, tag = 'scoped memory for tpu_custom_call.1']
    #allocation7 [shape = 'u8[8192]{0}', space=vmem, size = 0x2000, scoped, tag = 'input window, operand 6, single buffered']
    #allocation8 [shape = 'u8[8192]{0}', space=vmem, size = 0x2000, scoped, tag = 'input window, operand 7, single buffered']
    #allocation9 [shape = 's32[1]{0}', space=sflag, size = 0x4, scoped, tag = 'scoped memory for tpu_custom_call.1']
    #allocation10 [shape = 'u8[8192]{0}', space=vmem, size = 0x2000, scoped, tag = 'output window, operand 0']
    %16 = vsyncpa [#allocation3], 0
    %17 = vsyncpa [#allocation6], 0
    %18 = vsyncpa [#allocation9], 0
    %19 = vsyncpa [#allocation4], 0
    %s20 = scalar_lea.sflag [#allocation4], 1
    %21 = vsyncpa %s20, 0
    loop: start=0, step=1, limit=4
    $region2: #{tpu_custom_call.1} parent=1 // loop_pre_header
      _
    $region3: #{tpu_custom_call.1} parent=1 // loop_header
      %s23 = sphi 0, %s27
      %p24 = scmp.ge.s32.totalorder %s23, 4
      %s30 = sphi 0, %s42
      %s31 = sphi 0, %s38
      %s32 = sphi 0, %s30
      %s33 = sphi 0, %s31
      %s34 = sphi 0, %s32
      %s35 = sphi 0, %s33
      %s45 = sphi 0, %s47
      %s48 = sphi 0, %s45
      %s49 = sphi 0, %s48
      %s65 = sphi 0, %s49
      %s73 = sphi 0, %s75
      %s76 = sphi 0, %s73
      %s77 = sphi 0, %s76
      %s93 = sphi 0, %s77
      %s99 = sphi 0, %s101
      %s102 = sphi 0, %s99
      %s103 = sphi 0, %s102
      %s119 = sphi 0, %s103
      %s125 = sphi 0, %s127
      %s128 = sphi 0, %s125
      %s129 = sphi 0, %s128
      %s145 = sphi 0, %s129
      %s149 = sphi 0, %s149
      %s151 = sphi 0, %s149
      %s152 = sphi 0, %s151
      %s166 = sphi 0, %s152
      %s170 = sphi 0, %s170
      %s172 = sphi 0, %s170
      %s173 = sphi 0, %s172
      %s187 = sphi 0, %s173
      %s191 = sphi 0, %s191
      %s193 = sphi 0, %s191
      %s194 = sphi 0, %s193
      %s208 = sphi 0, %s194
      %s212 = sphi 0, %s212
      %s214 = sphi 0, %s212
      %s215 = sphi 0, %s214
      %s229 = sphi 0, %s215
      %s233 = sphi 0, %s233
      %s235 = sphi 0, %s233
      %s236 = sphi 0, %s235
      %s250 = sphi 0, %s236
      %s254 = sphi 0, %s254
      %s256 = sphi 0, %s254
      %s257 = sphi 0, %s256
      %s271 = sphi 0, %s257
      %s275 = sphi 0, %s275
      %s277 = sphi 0, %s275
      %s278 = sphi 0, %s277
      %s292 = sphi 0, %s278
      %s300 = sphi 0, %s302
      %s303 = sphi 0, %s300
      %s304 = sphi 0, %s303
      %s320 = sphi 0, %s304
    $region4: #{tpu_custom_call.1} parent=1 // loop_header_branch
      %26 = sbr.rel (%p24) target = $region8
    $region5: #{tpu_custom_call.1} parent=1 // loop_body
      %s28 = ssub.s32 %s23, 1
      %s29 = ssub.s32 %s23, 2
      %s36 = sadd.s32 1, %s31
      %p37 = scmp.ge.s32.totalorder %s36, 1
      %s38 = scalar_select %p37, 0, %s36
      %s39 = sadd.s32 1, %s30
      %s40 = scalar_select %p37, %s39, %s30
      %p41 = scmp.ge.s32.totalorder %s40, 2
      %s42 = scalar_select %p41, 0, %s40
      %s43 = ssub.s32 %s30, %s42
      %p44 = scmp.eq.s32.totalorder %s43, 0
      %s46 = sadd.s32 %s45, 1
      %s47 = scalar_select %p44, %s45, %s46
      %p50 = pneg %p44
      %p51 = scmp.eq.s32.totalorder %s23, 1
      %p52 = por %p50, %p51
      %p53 = scmp.ne.s32.totalorder %s45, %s48
      %p54 = scmp.eq.s32.totalorder %s23, 0
      %p55 = por %p53, %p54
      %p56 = scmp.ne.s32.totalorder %s45, %s48
      %p57 = scmp.eq.s32.totalorder %s28, 1
      %p58 = por %p56, %p57
      %p59 = scmp.ne.s32.totalorder %s48, %s49
      %p60 = scmp.eq.s32.totalorder %s28, 0
      %p61 = por %p59, %p60
      %p62 = scmp.ne.s32.totalorder %s48, %s49
      %p63 = scmp.eq.s32.totalorder %s29, 1
      %p64 = por %p62, %p63
      %p66 = scmp.ne.s32.totalorder %s49, %s65
      %p67 = scmp.eq.s32.totalorder %s29, 0
      %p68 = por %p66, %p67
      %s69 = ssub.s32 %s30, %s42
      %s70 = ssub.s32 %s31, %s38
      %s71 = sor.u32 %s69, %s70
      %p72 = scmp.eq.s32.totalorder %s71, 0
      %s74 = sadd.s32 %s73, 1
      %s75 = scalar_select %p72, %s73, %s74
      %p78 = pneg %p72
      %p79 = scmp.eq.s32.totalorder %s23, 1
      %p80 = por %p78, %p79
      %p81 = scmp.ne.s32.totalorder %s73, %s76
      %p82 = scmp.eq.s32.totalorder %s23, 0
      %p83 = por %p81, %p82
      %p84 = scmp.ne.s32.totalorder %s73, %s76
      %p85 = scmp.eq.s32.totalorder %s28, 1
      %p86 = por %p84, %p85
      %p87 = scmp.ne.s32.totalorder %s76, %s77
      %p88 = scmp.eq.s32.totalorder %s28, 0
      %p89 = por %p87, %p88
      %p90 = scmp.ne.s32.totalorder %s76, %s77
      %p91 = scmp.eq.s32.totalorder %s29, 1
      %p92 = por %p90, %p91
      %p94 = scmp.ne.s32.totalorder %s77, %s93
      %p95 = scmp.eq.s32.totalorder %s29, 0
      %p96 = por %p94, %p95
      %s97 = ssub.s32 %s30, %s42
      %p98 = scmp.eq.s32.totalorder %s97, 0
      %s100 = sadd.s32 %s99, 1
      %s101 = scalar_select %p98, %s99, %s100
      %p104 = pneg %p98
      %p105 = scmp.eq.s32.totalorder %s23, 1
      %p106 = por %p104, %p105
      %p107 = scmp.ne.s32.totalorder %s99, %s102
      %p108 = scmp.eq.s32.totalorder %s23, 0
      %p109 = por %p107, %p108
      %p110 = scmp.ne.s32.totalorder %s99, %s102
      %p111 = scmp.eq.s32.totalorder %s28, 1
      %p112 = por %p110, %p111
      %p113 = scmp.ne.s32.totalorder %s102, %s103
      %p114 = scmp.eq.s32.totalorder %s28, 0
      %p115 = por %p113, %p114
      %p116 = scmp.ne.s32.totalorder %s102, %s103
      %p117 = scmp.eq.s32.totalorder %s29, 1
      %p118 = por %p116, %p117
      %p120 = scmp.ne.s32.totalorder %s103, %s119
      %p121 = scmp.eq.s32.totalorder %s29, 0
      %p122 = por %p120, %p121
      %s123 = ssub.s32 %s31, %s38
      %p124 = scmp.eq.s32.totalorder %s123, 0
      %s126 = sadd.s32 %s125, 1
      %s127 = scalar_select %p124, %s125, %s126
      %p130 = pneg %p124
      %p131 = scmp.eq.s32.totalorder %s23, 1
      %p132 = por %p130, %p131
      %p133 = scmp.ne.s32.totalorder %s125, %s128
      %p134 = scmp.eq.s32.totalorder %s23, 0
      %p135 = por %p133, %p134
      %p136 = scmp.ne.s32.totalorder %s125, %s128
      %p137 = scmp.eq.s32.totalorder %s28, 1
      %p138 = por %p136, %p137
      %p139 = scmp.ne.s32.totalorder %s128, %s129
      %p140 = scmp.eq.s32.totalorder %s28, 0
      %p141 = por %p139, %p140
      %p142 = scmp.ne.s32.totalorder %s128, %s129
      %p143 = scmp.eq.s32.totalorder %s29, 1
      %p144 = por %p142, %p143
      %p146 = scmp.ne.s32.totalorder %s129, %s145
      %p147 = scmp.eq.s32.totalorder %s29, 0
      %p148 = por %p146, %p147
      %s150 = sadd.s32 %s149, 1
      %p153 = scmp.eq.s32.totalorder %s23, 1
      %p154 = scmp.ne.s32.totalorder %s149, %s151
      %p155 = scmp.eq.s32.totalorder %s23, 0
      %p156 = por %p154, %p155
      %p157 = scmp.ne.s32.totalorder %s149, %s151
      %p158 = scmp.eq.s32.totalorder %s28, 1
      %p159 = por %p157, %p158
      %p160 = scmp.ne.s32.totalorder %s151, %s152
      %p161 = scmp.eq.s32.totalorder %s28, 0
      %p162 = por %p160, %p161
      %p163 = scmp.ne.s32.totalorder %s151, %s152
      %p164 = scmp.eq.s32.totalorder %s29, 1
      %p165 = por %p163, %p164
      %p167 = scmp.ne.s32.totalorder %s152, %s166
      %p168 = scmp.eq.s32.totalorder %s29, 0
      %p169 = por %p167, %p168
      %s171 = sadd.s32 %s170, 1
      %p174 = scmp.eq.s32.totalorder %s23, 1
      %p175 = scmp.ne.s32.totalorder %s170, %s172
      %p176 = scmp.eq.s32.totalorder %s23, 0
      %p177 = por %p175, %p176
      %p178 = scmp.ne.s32.totalorder %s170, %s172
      %p179 = scmp.eq.s32.totalorder %s28, 1
      %p180 = por %p178, %p179
      %p181 = scmp.ne.s32.totalorder %s172, %s173
      %p182 = scmp.eq.s32.totalorder %s28, 0
      %p183 = por %p181, %p182
      %p184 = scmp.ne.s32.totalorder %s172, %s173
      %p185 = scmp.eq.s32.totalorder %s29, 1
      %p186 = por %p184, %p185
      %p188 = scmp.ne.s32.totalorder %s173, %s187
      %p189 = scmp.eq.s32.totalorder %s29, 0
      %p190 = por %p188, %p189
      %s192 = sadd.s32 %s191, 1
      %p195 = scmp.eq.s32.totalorder %s23, 1
      %p196 = scmp.ne.s32.totalorder %s191, %s193
      %p197 = scmp.eq.s32.totalorder %s23, 0
      %p198 = por %p196, %p197
      %p199 = scmp.ne.s32.totalorder %s191, %s193
      %p200 = scmp.eq.s32.totalorder %s28, 1
      %p201 = por %p199, %p200
      %p202 = scmp.ne.s32.totalorder %s193, %s194
      %p203 = scmp.eq.s32.totalorder %s28, 0
      %p204 = por %p202, %p203
      %p205 = scmp.ne.s32.totalorder %s193, %s194
      %p206 = scmp.eq.s32.totalorder %s29, 1
      %p207 = por %p205, %p206
      %p209 = scmp.ne.s32.totalorder %s194, %s208
      %p210 = scmp.eq.s32.totalorder %s29, 0
      %p211 = por %p209, %p210
      %s213 = sadd.s32 %s212, 1
      %p216 = scmp.eq.s32.totalorder %s23, 1
      %p217 = scmp.ne.s32.totalorder %s212, %s214
      %p218 = scmp.eq.s32.totalorder %s23, 0
      %p219 = por %p217, %p218
      %p220 = scmp.ne.s32.totalorder %s212, %s214
      %p221 = scmp.eq.s32.totalorder %s28, 1
      %p222 = por %p220, %p221
      %p223 = scmp.ne.s32.totalorder %s214, %s215
      %p224 = scmp.eq.s32.totalorder %s28, 0
      %p225 = por %p223, %p224
      %p226 = scmp.ne.s32.totalorder %s214, %s215
      %p227 = scmp.eq.s32.totalorder %s29, 1
      %p228 = por %p226, %p227
      %p230 = scmp.ne.s32.totalorder %s215, %s229
      %p231 = scmp.eq.s32.totalorder %s29, 0
      %p232 = por %p230, %p231
      %s234 = sadd.s32 %s233, 1
      %p237 = scmp.eq.s32.totalorder %s23, 1
      %p238 = scmp.ne.s32.totalorder %s233, %s235
      %p239 = scmp.eq.s32.totalorder %s23, 0
      %p240 = por %p238, %p239
      %p241 = scmp.ne.s32.totalorder %s233, %s235
      %p242 = scmp.eq.s32.totalorder %s28, 1
      %p243 = por %p241, %p242
      %p244 = scmp.ne.s32.totalorder %s235, %s236
      %p245 = scmp.eq.s32.totalorder %s28, 0
      %p246 = por %p244, %p245
      %p247 = scmp.ne.s32.totalorder %s235, %s236
      %p248 = scmp.eq.s32.totalorder %s29, 1
      %p249 = por %p247, %p248
      %p251 = scmp.ne.s32.totalorder %s236, %s250
      %p252 = scmp.eq.s32.totalorder %s29, 0
      %p253 = por %p251, %p252
      %s255 = sadd.s32 %s254, 1
      %p258 = scmp.eq.s32.totalorder %s23, 1
      %p259 = scmp.ne.s32.totalorder %s254, %s256
      %p260 = scmp.eq.s32.totalorder %s23, 0
      %p261 = por %p259, %p260
      %p262 = scmp.ne.s32.totalorder %s254, %s256
      %p263 = scmp.eq.s32.totalorder %s28, 1
      %p264 = por %p262, %p263
      %p265 = scmp.ne.s32.totalorder %s256, %s257
      %p266 = scmp.eq.s32.totalorder %s28, 0
      %p267 = por %p265, %p266
      %p268 = scmp.ne.s32.totalorder %s256, %s257
      %p269 = scmp.eq.s32.totalorder %s29, 1
      %p270 = por %p268, %p269
      %p272 = scmp.ne.s32.totalorder %s257, %s271
      %p273 = scmp.eq.s32.totalorder %s29, 0
      %p274 = por %p272, %p273
      %s276 = sadd.s32 %s275, 1
      %p279 = scmp.eq.s32.totalorder %s23, 1
      %p280 = scmp.ne.s32.totalorder %s275, %s277
      %p281 = scmp.eq.s32.totalorder %s23, 0
      %p282 = por %p280, %p281
      %p283 = scmp.ne.s32.totalorder %s275, %s277
      %p284 = scmp.eq.s32.totalorder %s28, 1
      %p285 = por %p283, %p284
      %p286 = scmp.ne.s32.totalorder %s277, %s278
      %p287 = scmp.eq.s32.totalorder %s28, 0
      %p288 = por %p286, %p287
      %p289 = scmp.ne.s32.totalorder %s277, %s278
      %p290 = scmp.eq.s32.totalorder %s29, 1
      %p291 = por %p289, %p290
      %p293 = scmp.ne.s32.totalorder %s278, %s292
      %p294 = scmp.eq.s32.totalorder %s29, 0
      %p295 = por %p293, %p294
      %s296 = ssub.s32 %s30, %s42
      %s297 = ssub.s32 %s31, %s38
      %s298 = sor.u32 %s296, %s297
      %p299 = scmp.eq.s32.totalorder %s298, 0
      %s301 = sadd.s32 %s300, 1
      %s302 = scalar_select %p299, %s300, %s301
      %p305 = pneg %p299
      %p306 = scmp.eq.s32.totalorder %s23, 1
      %p307 = por %p305, %p306
      %p308 = scmp.ne.s32.totalorder %s300, %s303
      %p309 = scmp.eq.s32.totalorder %s23, 0
      %p310 = por %p308, %p309
      %p311 = scmp.ne.s32.totalorder %s300, %s303
      %p312 = scmp.eq.s32.totalorder %s28, 1
      %p313 = por %p311, %p312
      %p314 = scmp.ne.s32.totalorder %s303, %s304
      %p315 = scmp.eq.s32.totalorder %s28, 0
      %p316 = por %p314, %p315
      %p317 = scmp.ne.s32.totalorder %s303, %s304
      %p318 = scmp.eq.s32.totalorder %s29, 1
      %p319 = por %p317, %p318
      %p321 = scmp.ne.s32.totalorder %s304, %s320
      %p322 = scmp.eq.s32.totalorder %s29, 0
      %p323 = por %p321, %p322
      %p324 = scmp.le.s32.totalorder 1, %s23
      %p325 = scmp.lt.s32.totalorder %s23, 3
      %p326 = pnand %p324, %p325
      %p327 = pneg %p326
      // Predicated region
      $region9: #{tpu_custom_call.1} parent=5 // pred_check
        _
      $region10: #{tpu_custom_call.1} parent=5 // pred_check_branch
        %329 = sbr.rel (%p326) target = $region12
      $region11: #{tpu_custom_call.1} parent=5 // pred_region
        %s330 = ssub.s32 %s23, 1
        // Predicated region
        $region13: #{tpu_custom_call.1} parent=11 // pred_check
          %p331 = pneg %p141
        $region14: #{tpu_custom_call.1} parent=11 // pred_check_branch
          %333 = sbr.rel (%p331) target = $region16
        $region15: #{tpu_custom_call.1} parent=11 // pred_region
          %p334 = scmp.lt.s32.totalorder %s33, 0
          %s335 = scalar_select %p334, %s33, 0
          %s336 = smul.addr %s335, 4
          %s337 = scalar_lea.vmem %s3, %s336
        $region16: #{tpu_custom_call.1} parent=11 // pred_fallthru
          _
        // Predicated region
        $region17: #{tpu_custom_call.1} parent=11 // pred_check
          %p338 = pneg %p162
        $region18: #{tpu_custom_call.1} parent=11 // pred_check_branch
          %340 = sbr.rel (%p338) target = $region20
        $region19: #{tpu_custom_call.1} parent=11 // pred_region
          %s342 = ssub.s32 256, 256
          %343 = vsyncadd [#allocation3], %s342
          %s344 = sshll.u32 [#allocation2], 4
          %s345 = int_to_ptr.vmem [resolvable:$true] %s344
          %350 = dma.hbm_to_vmem [thread:$0]  %s4, 256, %s345, [#allocation3], 64, 64, 4
        $region20: #{tpu_custom_call.1} parent=11 // pred_fallthru
          _
        // Predicated region
        $region21: #{tpu_custom_call.1} parent=11 // pred_check
          %p351 = pneg %p183
        $region22: #{tpu_custom_call.1} parent=11 // pred_check_branch
          %353 = sbr.rel (%p351) target = $region24
        $region23: #{tpu_custom_call.1} parent=11 // pred_region
          %s355 = ssub.s32 256, 256
          %356 = vsyncadd [#allocation6], %s355
          %s357 = sshll.u32 [#allocation5], 4
          %s358 = int_to_ptr.vmem [resolvable:$true] %s357
          %363 = dma.hbm_to_vmem [thread:$0]  %s5, 256, %s358, [#allocation6], 64, 64, 4
        $region24: #{tpu_custom_call.1} parent=11 // pred_fallthru
          _
        // Predicated region
        $region25: #{tpu_custom_call.1} parent=11 // pred_check
          %p364 = pneg %p204
        $region26: #{tpu_custom_call.1} parent=11 // pred_check_branch
          %366 = sbr.rel (%p364) target = $region28
        $region27: #{tpu_custom_call.1} parent=11 // pred_region
          %s368 = ssub.s32 256, 256
          %369 = vsyncadd [#allocation6], %s368
          %s370 = sshll.u32 [#allocation7], 4
          %s371 = int_to_ptr.vmem [resolvable:$true] %s370
          %376 = dma.hbm_to_vmem [thread:$0]  %s6, 256, %s371, [#allocation6], 64, 64, 4
        $region28: #{tpu_custom_call.1} parent=11 // pred_fallthru
          _
        // Predicated region
        $region29: #{tpu_custom_call.1} parent=11 // pred_check
          %p377 = pneg %p225
        $region30: #{tpu_custom_call.1} parent=11 // pred_check_branch
          %379 = sbr.rel (%p377) target = $region32
        $region31: #{tpu_custom_call.1} parent=11 // pred_region
          %s381 = ssub.s32 256, 256
          %382 = vsyncadd [#allocation9], %s381
          %s383 = sshll.u32 [#allocation8], 4
          %s384 = int_to_ptr.vmem [resolvable:$true] %s383
          %389 = dma.hbm_to_vmem [thread:$0]  %s7, 256, %s384, [#allocation9], 64, 64, 4
        $region32: #{tpu_custom_call.1} parent=11 // pred_fallthru
          _
        // Predicated region
        $region33: #{tpu_custom_call.1} parent=11 // pred_check
          %p390 = pneg %p246
        $region34: #{tpu_custom_call.1} parent=11 // pred_check_branch
          %392 = sbr.rel (%p390) target = $region36
        $region35: #{tpu_custom_call.1} parent=11 // pred_region
          _
        $region36: #{tpu_custom_call.1} parent=11 // pred_fallthru
          _
        // Predicated region
        $region37: #{tpu_custom_call.1} parent=11 // pred_check
          %p393 = pneg %p267
        $region38: #{tpu_custom_call.1} parent=11 // pred_check_branch
          %395 = sbr.rel (%p393) target = $region40
        $region39: #{tpu_custom_call.1} parent=11 // pred_region
          _
        $region40: #{tpu_custom_call.1} parent=11 // pred_fallthru
          _
        // Predicated region
        $region41: #{tpu_custom_call.1} parent=11 // pred_check
          %p396 = pneg %p288
        $region42: #{tpu_custom_call.1} parent=11 // pred_check_branch
          %398 = sbr.rel (%p396) target = $region44
        $region43: #{tpu_custom_call.1} parent=11 // pred_region
          _
        $region44: #{tpu_custom_call.1} parent=11 // pred_fallthru
          _
      $region12: #{tpu_custom_call.1} parent=5 // pred_fallthru
        _
      %p399 = scmp.lt.s32.totalorder %s23, 2
      // Predicated region
      $region45: #{tpu_custom_call.1} parent=5 // pred_check
        %p400 = pneg %p399
      $region46: #{tpu_custom_call.1} parent=5 // pred_check_branch
        %402 = sbr.rel (%p400) target = $region48
      $region47: #{tpu_custom_call.1} parent=5 // pred_region
        // Predicated region
        $region49: #{tpu_custom_call.1} parent=47 // pred_check
          %p403 = pneg %p55
        $region50: #{tpu_custom_call.1} parent=47 // pred_check_branch
          %405 = sbr.rel (%p403) target = $region52
        $region51: #{tpu_custom_call.1} parent=47 // pred_region
          %p406 = scmp.lt.s32.totalorder %s30, 1
          %s407 = scalar_select %p406, %s30, 1
          %s408 = smul.addr %s407, 8
          %s409 = scalar_lea.vmem %s0, %s408
        $region52: #{tpu_custom_call.1} parent=47 // pred_fallthru
          _
        // Predicated region
        $region53: #{tpu_custom_call.1} parent=47 // pred_check
          %p410 = pneg %p83
        $region54: #{tpu_custom_call.1} parent=47 // pred_check_branch
          %412 = sbr.rel (%p410) target = $region56
        $region55: #{tpu_custom_call.1} parent=47 // pred_region
          %p413 = scmp.lt.s32.totalorder %s30, 1
          %s414 = scalar_select %p413, %s30, 1
          %p415 = scmp.lt.s32.totalorder %s31, 0
          %s416 = scalar_select %p415, %s31, 0
          %s417 = sadd.s32 %s416, %s414
          %s418 = smul.addr %s417, 8
          %s419 = scalar_lea.vmem %s1, %s418
        $region56: #{tpu_custom_call.1} parent=47 // pred_fallthru
          _
        // Predicated region
        $region57: #{tpu_custom_call.1} parent=47 // pred_check
          %p420 = pneg %p109
        $region58: #{tpu_custom_call.1} parent=47 // pred_check_branch
          %422 = sbr.rel (%p420) target = $region60
        $region59: #{tpu_custom_call.1} parent=47 // pred_region
          %p423 = scmp.lt.s32.totalorder %s30, 1
          %s424 = scalar_select %p423, %s30, 1
          %s425 = scalar_lea.vmem %s2, %s424
        $region60: #{tpu_custom_call.1} parent=47 // pred_fallthru
          _
      $region48: #{tpu_custom_call.1} parent=5 // pred_fallthru
        _
      %p426 = scmp.le.s32.totalorder 1, %s23
      %p427 = scmp.lt.s32.totalorder %s23, 3
      %p428 = pnand %p426, %p427
      %p429 = pneg %p428
      // Predicated region
      $region61: #{tpu_custom_call.1} parent=5 // pred_check
        _
      $region62: #{tpu_custom_call.1} parent=5 // pred_check_branch
        %431 = sbr.rel (%p428) target = $region64
      $region63: #{tpu_custom_call.1} parent=5 // pred_region
        %s432 = ssub.s32 %s23, 1
        // Predicated region
        $region65: #{tpu_custom_call.1} parent=63 // pred_check
          %p433 = pneg %p162
        $region66: #{tpu_custom_call.1} parent=63 // pred_check_branch
          %435 = sbr.rel (%p433) target = $region68
        $region67: #{tpu_custom_call.1} parent=63 // pred_region
          %436 = dma.done [#allocation3], 256
        $region68: #{tpu_custom_call.1} parent=63 // pred_fallthru
          _
        // Predicated region
        $region69: #{tpu_custom_call.1} parent=63 // pred_check
          %p437 = pneg %p183
        $region70: #{tpu_custom_call.1} parent=63 // pred_check_branch
          %439 = sbr.rel (%p437) target = $region72
        $region71: #{tpu_custom_call.1} parent=63 // pred_region
          %440 = dma.done [#allocation6], 256
        $region72: #{tpu_custom_call.1} parent=63 // pred_fallthru
          _
        // Predicated region
        $region73: #{tpu_custom_call.1} parent=63 // pred_check
          %p441 = pneg %p204
        $region74: #{tpu_custom_call.1} parent=63 // pred_check_branch
          %443 = sbr.rel (%p441) target = $region76
        $region75: #{tpu_custom_call.1} parent=63 // pred_region
          %444 = dma.done [#allocation6], 256
        $region76: #{tpu_custom_call.1} parent=63 // pred_fallthru
          _
        // Predicated region
        $region77: #{tpu_custom_call.1} parent=63 // pred_check
          %p445 = pneg %p225
        $region78: #{tpu_custom_call.1} parent=63 // pred_check_branch
          %447 = sbr.rel (%p445) target = $region80
        $region79: #{tpu_custom_call.1} parent=63 // pred_region
          %448 = dma.done [#allocation9], 256
        $region80: #{tpu_custom_call.1} parent=63 // pred_fallthru
          _
        %p449 = scmp.lt.s32.totalorder %s32, 1
        %s450 = scalar_select %p449, %s32, 1
        %s451 = smul.addr %s450, 8
        %s452 = scalar_lea.vmem %s0, %s451
        %p453 = pneg %p61
        %p454 = pneg %p58
        %p455 = scmp.lt.s32.totalorder %s32, 1
        %s456 = scalar_select %p455, %s32, 1
        %p457 = scmp.lt.s32.totalorder %s33, 0
        %s458 = scalar_select %p457, %s33, 0
        %s459 = sadd.s32 %s458, %s456
        %s460 = smul.addr %s459, 8
        %s461 = scalar_lea.vmem %s1, %s460
        %p462 = pneg %p89
        %p463 = pneg %p86
        %p464 = scmp.lt.s32.totalorder %s32, 1
        %s465 = scalar_select %p464, %s32, 1
        %s466 = scalar_lea.vmem %s2, %s465
        %p467 = pneg %p115
        %p468 = pneg %p112
        %p469 = scmp.lt.s32.totalorder %s33, 0
        %s470 = scalar_select %p469, %s33, 0
        %s471 = smul.addr %s470, 4
        %s472 = scalar_lea.vmem %s3, %s471
        %p473 = pneg %p141
        %p474 = pneg %p138
        %p475 = pneg %p162
        %p476 = pneg %p159
        %p477 = pneg %p183
        %p478 = pneg %p180
        %p479 = pneg %p204
        %p480 = pneg %p201
        %p481 = pneg %p225
        %p482 = pneg %p222
        %p483 = pneg %p246
        %p484 = pneg %p243
        %p485 = pneg %p267
        %p486 = pneg %p264
        %p487 = pneg %p288
        %p488 = pneg %p285
        %p489 = pneg %p316
        %p490 = pneg %p313
        %s491 = sand.u32 %s303, 1
        %s492 = scalar_lea.sflag [#allocation4], %s491
        %s493 = sand.u32 %s303, 1
        %s494 = smul.addr %s493, 8
        %s495 = scalar_lea.vmem [#allocation10], %s494
        %p496 = scmp.lt.s32.totalorder %s32, 1
        %s497 = scalar_select %p496, %s32, 1
        %s498 = smul.addr %s497, 8
        %s499 = scalar_lea.vmem %s0, %s498
        %p500 = scmp.lt.s32.totalorder %s32, 1
        %s501 = scalar_select %p500, %s32, 1
        %p502 = scmp.lt.s32.totalorder %s33, 0
        %s503 = scalar_select %p502, %s33, 0
        %s504 = sadd.s32 %s503, %s501
        %s505 = smul.addr %s504, 8
        %s506 = scalar_lea.vmem %s1, %s505
        %p507 = scmp.lt.s32.totalorder %s32, 1
        %s508 = scalar_select %p507, %s32, 1
        %s509 = scalar_lea.vmem %s2, %s508
        %p510 = scmp.lt.s32.totalorder %s33, 0
        %s511 = scalar_select %p510, %s33, 0
        %s512 = smul.addr %s511, 4
        %s513 = scalar_lea.vmem %s3, %s512
        %v515 = vld [vmem:[%s499] sm:$0xff]
        %v516 = vld [vmem:[%s506] sm:$0xff]
        %v517 = vld [vmem:[%s9] sm:$0x1]
        %v518 = vmul.f32 %v515, %v515
        %vm519 = vcmask 261120
        %v520 = vsel %vm519, %v518, 0.0
        %521 = vadd.xlane.f32.xlu0 %v520
        %v522 = vpop.xlane.xlu0 %521
        %v523 = vrcp.pop 32.0
        %v524 = vmul.f32 %v522, %v523
        %v525 = vadd.f32 %v524, 1e-06
        %v526 = vrsqrt.pop %v525
        %v527 = vmul.f32 %v515, %v526
        %v529 = vlaneseq
        %v530 = vshrl.u32 %v529, 7
        %v531 = vsub.s32 0, %v530
        %v532 = vrot.slane %v517, %v531
        %v534 = vmul.f32 %v527, %v532
        %v535 = vpack.c.bf16 %v534, %v534
        %v536 = vmul.f32 %v516, %v516
        %v537 = vsel %vm519, %v536, 0.0
        %538 = vadd.xlane.f32.xlu0 %v537
        %v539 = vpop.xlane.xlu0 %538
        %v540 = vmul.f32 %v539, %v523
        %v541 = vadd.f32 %v540, 1e-06
        %v542 = vrsqrt.pop %v541
        %v543 = vmul.f32 %v516, %v542
        %v544 = vmul.f32 %v543, %v532
        %v545 = vpack.c.bf16 %v544, %v544
        %v546 = vld [vmem:[#allocation2] sm:$0xf]
        %v547 = vld [vmem:[#allocation2 + $0x4] sm:$0xf]
        %v548 = vld [vmem:[#allocation2 + $0x8] sm:$0xf]
        %v549 = vld [vmem:[#allocation2 + $0xc] sm:$0xf]
        %v554 = vunpack.c.l.b16 %v546
        %v555 = vunpack.c.l.b16 %v547
        %v556 = vunpack.c.l.b16 %v548
        %v557 = vunpack.c.l.b16 %v549
        %v558 = vpack.c.b16 %v555, %v554
        %v559 = vpack.c.b16 %v557, %v556
        %v563 = vsel %vm519, %v545, 0
        %565 = vmatprep.subr.bf16.mxu0 0
        %566 = vmatpush1.bf16.msra.mxu0 %v558
        %567 = vmatprep.subr.bf16.mxu0 0
        %568 = vmatpush1.bf16.msra.mxu0 %v559
        %569 = vmatprep.subr.bf16.mxu0 0
        %570 = vmatpush1.bf16.msra.mxu0 0
        %571 = vmatprep.subr.bf16.mxu0 0
        %572 = vmatpush1.bf16.msra.mxu0 0
        %573 = vmatprep.subr.bf16.mxu0 0
        %574 = vmatpush1.bf16.msra.mxu0 0
        %575 = vmatprep.subr.bf16.mxu0 0
        %576 = vmatpush1.bf16.msra.mxu0 0
        %577 = vmatprep.subr.bf16.mxu0 0
        %578 = vmatpush1.bf16.msra.mxu0 0
        %579 = vmatprep.subr.bf16.mxu0 0
        %580 = vmatpush1.bf16.msra.mxu0 0
        %581 = vmatprep.subr.bf16.mxu0 0
        %582 = vmatpush1.bf16.msra.mxu0 0
        %583 = vmatprep.subr.bf16.mxu0 0
        %584 = vmatpush1.bf16.msra.mxu0 0
        %585 = vmatprep.subr.bf16.mxu0 0
        %586 = vmatpush1.bf16.msra.mxu0 0
        %587 = vmatprep.subr.bf16.mxu0 0
        %588 = vmatpush1.bf16.msra.mxu0 0
        %589 = vmatprep.subr.bf16.mxu0 0
        %590 = vmatpush1.bf16.msra.mxu0 0
        %591 = vmatprep.subr.bf16.mxu0 0
        %592 = vmatpush1.bf16.msra.mxu0 0
        %593 = vmatprep.subr.bf16.mxu0 0
        %594 = vmatpush1.bf16.msra.mxu0 0
        %595 = vmatprep.subr.bf16.mxu0 0
        %596 = vmatpush1.bf16.msra.mxu0 0
        %597 = vmatprep.mubr.bf16.mxu0 0
        %598 = vmatmul.mubr.bf16.gmra.mrb[0].mxu0 %v563
        %v599 = vpop.f32.mrb[0].mxu0
        %v600 = vadd.f32 0.0, %v599
        %v601 = vpop.f32.mrb[0].mxu0
        %v602 = vpop.f32.mrb[0].mxu0
        %v603 = vpop.f32.mrb[0].mxu0
        %604 = vdwg.mxu0
        %v605 = vld [vmem:[#allocation5] sm:$0xf]
        %v606 = vld [vmem:[#allocation5 + $0x4] sm:$0xf]
        %v607 = vld [vmem:[#allocation5 + $0x8] sm:$0xf]
        %v608 = vld [vmem:[#allocation5 + $0xc] sm:$0xf]
        %v613 = vunpack.c.l.b16 %v605
        %v614 = vunpack.c.l.b16 %v606
        %v615 = vunpack.c.l.b16 %v607
        %v616 = vunpack.c.l.b16 %v608
        %v617 = vpack.c.b16 %v614, %v613
        %v618 = vpack.c.b16 %v616, %v615
        %v622 = vsel %vm519, %v535, 0
        %624 = vmatprep.subr.bf16.mxu0 0
        %625 = vmatpush1.bf16.msra.mxu0 %v617
        %626 = vmatprep.subr.bf16.mxu0 0
        %627 = vmatpush1.bf16.msra.mxu0 %v618
        %628 = vmatprep.subr.bf16.mxu0 0
        %629 = vmatpush1.bf16.msra.mxu0 0
        %630 = vmatprep.subr.bf16.mxu0 0
        %631 = vmatpush1.bf16.msra.mxu0 0
        %632 = vmatprep.subr.bf16.mxu0 0
        %633 = vmatpush1.bf16.msra.mxu0 0
        %634 = vmatprep.subr.bf16.mxu0 0
        %635 = vmatpush1.bf16.msra.mxu0 0
        %636 = vmatprep.subr.bf16.mxu0 0
        %637 = vmatpush1.bf16.msra.mxu0 0
        %638 = vmatprep.subr.bf16.mxu0 0
        %639 = vmatpush1.bf16.msra.mxu0 0
        %640 = vmatprep.subr.bf16.mxu0 0
        %641 = vmatpush1.bf16.msra.mxu0 0
        %642 = vmatprep.subr.bf16.mxu0 0
        %643 = vmatpush1.bf16.msra.mxu0 0
        %644 = vmatprep.subr.bf16.mxu0 0
        %645 = vmatpush1.bf16.msra.mxu0 0
        %646 = vmatprep.subr.bf16.mxu0 0
        %647 = vmatpush1.bf16.msra.mxu0 0
        %648 = vmatprep.subr.bf16.mxu0 0
        %649 = vmatpush1.bf16.msra.mxu0 0
        %650 = vmatprep.subr.bf16.mxu0 0
        %651 = vmatpush1.bf16.msra.mxu0 0
        %652 = vmatprep.subr.bf16.mxu0 0
        %653 = vmatpush1.bf16.msra.mxu0 0
        %654 = vmatprep.subr.bf16.mxu0 0
        %655 = vmatpush1.bf16.msra.mxu0 0
        %656 = vmatprep.mubr.bf16.mxu0 0
        %657 = vmatmul.mubr.bf16.gmra.mrb[0].mxu0 %v622
        %v658 = vpop.f32.mrb[0].mxu0
        %v659 = vadd.f32 0.0, %v658
        %v660 = vpop.f32.mrb[0].mxu0
        %v661 = vpop.f32.mrb[0].mxu0
        %v662 = vpop.f32.mrb[0].mxu0
        %663 = vdwg.mxu0
        %v664 = vpack.c.bf16 %v600, %v600
        %666 = vrot.lane.b32.xlu0 %v664, 120
        %v667 = vpop.permute.xlu0 %666
        %668 = vrot.lane.b32.xlu0 %v664, 112
        %v669 = vpop.permute.xlu0 %668
        %670 = vrot.lane.b32.xlu0 %v664, 104
        %v671 = vpop.permute.xlu0 %670
        %v673 = vunpack.c.l.s4 1983009808
        %v674 = vunpack.c.0.s8 %v673
        %v675 = vlaneseq
        %v676 = vshrl.u32 %v675, 7
        %v677 = vsub.s32 %v674, %v676
        %v678 = vrot.slane %v664, %v677
        %v681 = vunpack.c.l.s4 1983009808
        %v682 = vunpack.c.0.s8 %v681
        %v683 = vlaneseq
        %v684 = vshrl.u32 %v683, 7
        %v685 = vsub.s32 %v682, %v684
        %v686 = vrot.slane %v669, %v685
        %v687 = vcombine.low %v678, %v686
        %v688 = vcombine.high %v678, %v686
        %v690 = vunpack.c.l.s4 1934713408
        %v691 = vunpack.c.0.s8 %v690
        %v692 = vlaneseq
        %v693 = vshrl.u32 %v692, 7
        %v694 = vsub.s32 %v691, %v693
        %v695 = vrot.slane %v687, %v694
        %v697 = vunpack.c.l.s4 1934713408
        %v698 = vunpack.c.0.s8 %v697
        %v699 = vlaneseq
        %v700 = vshrl.u32 %v699, 7
        %v701 = vsub.s32 %v698, %v700
        %v702 = vrot.slane %v688, %v701
        %v703 = vcombine.high %v695, 0
        %v704 = vcombine.high %v702, 0
        %v707 = vunpack.c.l.s4 1983009808
        %v708 = vunpack.c.0.s8 %v707
        %v709 = vlaneseq
        %v710 = vshrl.u32 %v709, 7
        %v711 = vsub.s32 %v708, %v710
        %v712 = vrot.slane %v667, %v711
        %v715 = vunpack.c.l.s4 1983009808
        %v716 = vunpack.c.0.s8 %v715
        %v717 = vlaneseq
        %v718 = vshrl.u32 %v717, 7
        %v719 = vsub.s32 %v716, %v718
        %v720 = vrot.slane %v671, %v719
        %v721 = vcombine.low %v712, %v720
        %v722 = vcombine.high %v712, %v720
        %v724 = vunpack.c.l.s4 1934713408
        %v725 = vunpack.c.0.s8 %v724
        %v726 = vlaneseq
        %v727 = vshrl.u32 %v726, 7
        %v728 = vsub.s32 %v725, %v727
        %v729 = vrot.slane %v721, %v728
        %v731 = vunpack.c.l.s4 1934713408
        %v732 = vunpack.c.0.s8 %v731
        %v733 = vlaneseq
        %v734 = vshrl.u32 %v733, 7
        %v735 = vsub.s32 %v732, %v734
        %v736 = vrot.slane %v722, %v735
        %v737 = vcombine.high %v729, 0
        %v738 = vcombine.high %v736, 0
        %v741 = vpack.i.b16 %v729, %v695
        %v743 = vshrl.u32 %v695, 16
        %v744 = vshrl.u32 %v729, 16
        %v745 = vpack.i.b16 %v744, %v743
        %v749 = vpack.i.b16 %v737, %v703
        %v751 = vshrl.u32 %v703, 16
        %v752 = vshrl.u32 %v737, 16
        %v753 = vpack.i.b16 %v752, %v751
        %v757 = vpack.i.b16 %v736, %v702
        %v759 = vshrl.u32 %v702, 16
        %v760 = vshrl.u32 %v736, 16
        %v761 = vpack.i.b16 %v760, %v759
        %v765 = vpack.i.b16 %v738, %v704
        %v767 = vshrl.u32 %v704, 16
        %v768 = vshrl.u32 %v738, 16
        %v769 = vpack.i.b16 %v768, %v767
        %v771 = vcombine.low %v741, %v757
        %v773 = vunpack.c.l.s4 1983009808
        %v774 = vunpack.c.0.s8 %v773
        %v775 = vlaneseq
        %v776 = vshrl.u32 %v775, 7
        %v777 = vsub.s32 %v774, %v776
        %v778 = vrot.slane %v771, %v777
        %v779 = vcombine.low %v749, %v765
        %v781 = vunpack.c.l.s4 1983009808
        %v782 = vunpack.c.0.s8 %v781
        %v783 = vlaneseq
        %v784 = vshrl.u32 %v783, 7
        %v785 = vsub.s32 %v782, %v784
        %v786 = vrot.slane %v779, %v785
        %v787 = vcombine.low %v778, %v786
        %v789 = vunpack.c.l.s4 1934713408
        %v790 = vunpack.c.0.s8 %v789
        %v791 = vlaneseq
        %v792 = vshrl.u32 %v791, 7
        %v793 = vsub.s32 %v790, %v792
        %v794 = vrot.slane %v787, %v793
        %v795 = vcombine.high %v794, 0
        %v796 = vcombine.low %v745, %v761
        %v798 = vunpack.c.l.s4 1983009808
        %v799 = vunpack.c.0.s8 %v798
        %v800 = vlaneseq
        %v801 = vshrl.u32 %v800, 7
        %v802 = vsub.s32 %v799, %v801
        %v803 = vrot.slane %v796, %v802
        %v804 = vcombine.low %v753, %v769
        %v806 = vunpack.c.l.s4 1983009808
        %v807 = vunpack.c.0.s8 %v806
        %v808 = vlaneseq
        %v809 = vshrl.u32 %v808, 7
        %v810 = vsub.s32 %v807, %v809
        %v811 = vrot.slane %v804, %v810
        %v812 = vcombine.low %v803, %v811
        %v814 = vunpack.c.l.s4 1934713408
        %v815 = vunpack.c.0.s8 %v814
        %v816 = vlaneseq
        %v817 = vshrl.u32 %v816, 7
        %v818 = vsub.s32 %v815, %v817
        %v819 = vrot.slane %v812, %v818
        %v820 = vcombine.high %v819, 0
        %v823 = vpack.i.b16 %v819, %v794
        %v824 = vshrl.u32 %v794, 16
        %v825 = vshrl.u32 %v819, 16
        %v826 = vpack.i.b16 %v825, %v824
        %v829 = vpack.i.b16 %v820, %v795
        %v830 = vshrl.u32 %v795, 16
        %v831 = vshrl.u32 %v820, 16
        %v832 = vpack.i.b16 %v831, %v830
        %v833 = vpack.c.bf16 %v659, %v659
        %835 = vrot.lane.b32.xlu0 %v833, 120
        %v836 = vpop.permute.xlu0 %835
        %837 = vrot.lane.b32.xlu0 %v833, 112
        %v838 = vpop.permute.xlu0 %837
        %839 = vrot.lane.b32.xlu0 %v833, 104
        %v840 = vpop.permute.xlu0 %839
        %v842 = vunpack.c.l.s4 1983009808
        %v843 = vunpack.c.0.s8 %v842
        %v844 = vlaneseq
        %v845 = vshrl.u32 %v844, 7
        %v846 = vsub.s32 %v843, %v845
        %v847 = vrot.slane %v833, %v846
        %v850 = vunpack.c.l.s4 1983009808
        %v851 = vunpack.c.0.s8 %v850
        %v852 = vlaneseq
        %v853 = vshrl.u32 %v852, 7
        %v854 = vsub.s32 %v851, %v853
        %v855 = vrot.slane %v838, %v854
        %v856 = vcombine.low %v847, %v855
        %v857 = vcombine.high %v847, %v855
        %v859 = vunpack.c.l.s4 1934713408
        %v860 = vunpack.c.0.s8 %v859
        %v861 = vlaneseq
        %v862 = vshrl.u32 %v861, 7
        %v863 = vsub.s32 %v860, %v862
        %v864 = vrot.slane %v856, %v863
        %v866 = vunpack.c.l.s4 1934713408
        %v867 = vunpack.c.0.s8 %v866
        %v868 = vlaneseq
        %v869 = vshrl.u32 %v868, 7
        %v870 = vsub.s32 %v867, %v869
        %v871 = vrot.slane %v857, %v870
        %v872 = vcombine.high %v864, 0
        %v873 = vcombine.high %v871, 0
        %v876 = vunpack.c.l.s4 1983009808
        %v877 = vunpack.c.0.s8 %v876
        %v878 = vlaneseq
        %v879 = vshrl.u32 %v878, 7
        %v880 = vsub.s32 %v877, %v879
        %v881 = vrot.slane %v836, %v880
        %v884 = vunpack.c.l.s4 1983009808
        %v885 = vunpack.c.0.s8 %v884
        %v886 = vlaneseq
        %v887 = vshrl.u32 %v886, 7
        %v888 = vsub.s32 %v885, %v887
        %v889 = vrot.slane %v840, %v888
        %v890 = vcombine.low %v881, %v889
        %v891 = vcombine.high %v881, %v889
        %v893 = vunpack.c.l.s4 1934713408
        %v894 = vunpack.c.0.s8 %v893
        %v895 = vlaneseq
        %v896 = vshrl.u32 %v895, 7
        %v897 = vsub.s32 %v894, %v896
        %v898 = vrot.slane %v890, %v897
        %v900 = vunpack.c.l.s4 1934713408
        %v901 = vunpack.c.0.s8 %v900
        %v902 = vlaneseq
        %v903 = vshrl.u32 %v902, 7
        %v904 = vsub.s32 %v901, %v903
        %v905 = vrot.slane %v891, %v904
        %v906 = vcombine.high %v898, 0
        %v907 = vcombine.high %v905, 0
        %v910 = vpack.i.b16 %v898, %v864
        %v912 = vshrl.u32 %v864, 16
        %v913 = vshrl.u32 %v898, 16
        %v914 = vpack.i.b16 %v913, %v912
        %v918 = vpack.i.b16 %v906, %v872
        %v920 = vshrl.u32 %v872, 16
        %v921 = vshrl.u32 %v906, 16
        %v922 = vpack.i.b16 %v921, %v920
        %v926 = vpack.i.b16 %v905, %v871
        %v928 = vshrl.u32 %v871, 16
        %v929 = vshrl.u32 %v905, 16
        %v930 = vpack.i.b16 %v929, %v928
        %v934 = vpack.i.b16 %v907, %v873
        %v936 = vshrl.u32 %v873, 16
        %v937 = vshrl.u32 %v907, 16
        %v938 = vpack.i.b16 %v937, %v936
        %v940 = vcombine.low %v910, %v926
        %v942 = vunpack.c.l.s4 1983009808
        %v943 = vunpack.c.0.s8 %v942
        %v944 = vlaneseq
        %v945 = vshrl.u32 %v944, 7
        %v946 = vsub.s32 %v943, %v945
        %v947 = vrot.slane %v940, %v946
        %v948 = vcombine.low %v918, %v934
        %v950 = vunpack.c.l.s4 1983009808
        %v951 = vunpack.c.0.s8 %v950
        %v952 = vlaneseq
        %v953 = vshrl.u32 %v952, 7
        %v954 = vsub.s32 %v951, %v953
        %v955 = vrot.slane %v948, %v954
        %v956 = vcombine.low %v947, %v955
        %v958 = vunpack.c.l.s4 1934713408
        %v959 = vunpack.c.0.s8 %v958
        %v960 = vlaneseq
        %v961 = vshrl.u32 %v960, 7
        %v962 = vsub.s32 %v959, %v961
        %v963 = vrot.slane %v956, %v962
        %v964 = vcombine.high %v963, 0
        %v965 = vcombine.low %v914, %v930
        %v967 = vunpack.c.l.s4 1983009808
        %v968 = vunpack.c.0.s8 %v967
        %v969 = vlaneseq
        %v970 = vshrl.u32 %v969, 7
        %v971 = vsub.s32 %v968, %v970
        %v972 = vrot.slane %v965, %v971
        %v973 = vcombine.low %v922, %v938
        %v975 = vunpack.c.l.s4 1983009808
        %v976 = vunpack.c.0.s8 %v975
        %v977 = vlaneseq
        %v978 = vshrl.u32 %v977, 7
        %v979 = vsub.s32 %v976, %v978
        %v980 = vrot.slane %v973, %v979
        %v981 = vcombine.low %v972, %v980
        %v983 = vunpack.c.l.s4 1934713408
        %v984 = vunpack.c.0.s8 %v983
        %v985 = vlaneseq
        %v986 = vshrl.u32 %v985, 7
        %v987 = vsub.s32 %v984, %v986
        %v988 = vrot.slane %v981, %v987
        %v989 = vcombine.high %v988, 0
        %v992 = vpack.i.b16 %v988, %v963
        %v993 = vshrl.u32 %v963, 16
        %v994 = vshrl.u32 %v988, 16
        %v995 = vpack.i.b16 %v994, %v993
        %v998 = vpack.i.b16 %v989, %v964
        %v999 = vshrl.u32 %v964, 16
        %v1000 = vshrl.u32 %v989, 16
        %v1001 = vpack.i.b16 %v1000, %v999
        %1002 = vrot.lane.b32.xlu0 %v833, 96
        %v1003 = vpop.permute.xlu0 %1002
        %1004 = vrot.lane.b32.xlu0 %v836, 96
        %v1005 = vpop.permute.xlu0 %1004
        %1006 = vrot.lane.b32.xlu0 %v838, 96
        %v1007 = vpop.permute.xlu0 %1006
        %1008 = vrot.lane.b32.xlu0 %v840, 96
        %v1009 = vpop.permute.xlu0 %1008
        %v1012 = vunpack.c.l.s4 1983009808
        %v1013 = vunpack.c.0.s8 %v1012
        %v1014 = vlaneseq
        %v1015 = vshrl.u32 %v1014, 7
        %v1016 = vsub.s32 %v1013, %v1015
        %v1017 = vrot.slane %v1003, %v1016
        %v1020 = vunpack.c.l.s4 1983009808
        %v1021 = vunpack.c.0.s8 %v1020
        %v1022 = vlaneseq
        %v1023 = vshrl.u32 %v1022, 7
        %v1024 = vsub.s32 %v1021, %v1023
        %v1025 = vrot.slane %v1007, %v1024
        %v1026 = vcombine.low %v1017, %v1025
        %v1027 = vcombine.high %v1017, %v1025
        %v1029 = vunpack.c.l.s4 1934713408
        %v1030 = vunpack.c.0.s8 %v1029
        %v1031 = vlaneseq
        %v1032 = vshrl.u32 %v1031, 7
        %v1033 = vsub.s32 %v1030, %v1032
        %v1034 = vrot.slane %v1026, %v1033
        %v1036 = vunpack.c.l.s4 1934713408
        %v1037 = vunpack.c.0.s8 %v1036
        %v1038 = vlaneseq
        %v1039 = vshrl.u32 %v1038, 7
        %v1040 = vsub.s32 %v1037, %v1039
        %v1041 = vrot.slane %v1027, %v1040
        %v1042 = vcombine.high %v1034, 0
        %v1043 = vcombine.high %v1041, 0
        %v1046 = vunpack.c.l.s4 1983009808
        %v1047 = vunpack.c.0.s8 %v1046
        %v1048 = vlaneseq
        %v1049 = vshrl.u32 %v1048, 7
        %v1050 = vsub.s32 %v1047, %v1049
        %v1051 = vrot.slane %v1005, %v1050
        %v1054 = vunpack.c.l.s4 1983009808
        %v1055 = vunpack.c.0.s8 %v1054
        %v1056 = vlaneseq
        %v1057 = vshrl.u32 %v1056, 7
        %v1058 = vsub.s32 %v1055, %v1057
        %v1059 = vrot.slane %v1009, %v1058
        %v1060 = vcombine.low %v1051, %v1059
        %v1061 = vcombine.high %v1051, %v1059
        %v1063 = vunpack.c.l.s4 1934713408
        %v1064 = vunpack.c.0.s8 %v1063
        %v1065 = vlaneseq
        %v1066 = vshrl.u32 %v1065, 7
        %v1067 = vsub.s32 %v1064, %v1066
        %v1068 = vrot.slane %v1060, %v1067
        %v1070 = vunpack.c.l.s4 1934713408
        %v1071 = vunpack.c.0.s8 %v1070
        %v1072 = vlaneseq
        %v1073 = vshrl.u32 %v1072, 7
        %v1074 = vsub.s32 %v1071, %v1073
        %v1075 = vrot.slane %v1061, %v1074
        %v1076 = vcombine.high %v1068, 0
        %v1077 = vcombine.high %v1075, 0
        %v1080 = vpack.i.b16 %v1068, %v1034
        %v1082 = vshrl.u32 %v1034, 16
        %v1083 = vshrl.u32 %v1068, 16
        %v1084 = vpack.i.b16 %v1083, %v1082
        %v1088 = vpack.i.b16 %v1076, %v1042
        %v1090 = vshrl.u32 %v1042, 16
        %v1091 = vshrl.u32 %v1076, 16
        %v1092 = vpack.i.b16 %v1091, %v1090
        %v1096 = vpack.i.b16 %v1075, %v1041
        %v1098 = vshrl.u32 %v1041, 16
        %v1099 = vshrl.u32 %v1075, 16
        %v1100 = vpack.i.b16 %v1099, %v1098
        %v1104 = vpack.i.b16 %v1077, %v1043
        %v1106 = vshrl.u32 %v1043, 16
        %v1107 = vshrl.u32 %v1077, 16
        %v1108 = vpack.i.b16 %v1107, %v1106
        %v1110 = vcombine.low %v1080, %v1096
        %v1112 = vunpack.c.l.s4 1983009808
        %v1113 = vunpack.c.0.s8 %v1112
        %v1114 = vlaneseq
        %v1115 = vshrl.u32 %v1114, 7
        %v1116 = vsub.s32 %v1113, %v1115
        %v1117 = vrot.slane %v1110, %v1116
        %v1118 = vcombine.low %v1088, %v1104
        %v1120 = vunpack.c.l.s4 1983009808
        %v1121 = vunpack.c.0.s8 %v1120
        %v1122 = vlaneseq
        %v1123 = vshrl.u32 %v1122, 7
        %v1124 = vsub.s32 %v1121, %v1123
        %v1125 = vrot.slane %v1118, %v1124
        %v1126 = vcombine.low %v1117, %v1125
        %v1128 = vunpack.c.l.s4 1934713408
        %v1129 = vunpack.c.0.s8 %v1128
        %v1130 = vlaneseq
        %v1131 = vshrl.u32 %v1130, 7
        %v1132 = vsub.s32 %v1129, %v1131
        %v1133 = vrot.slane %v1126, %v1132
        %v1134 = vcombine.high %v1133, 0
        %v1135 = vcombine.low %v1084, %v1100
        %v1137 = vunpack.c.l.s4 1983009808
        %v1138 = vunpack.c.0.s8 %v1137
        %v1139 = vlaneseq
        %v1140 = vshrl.u32 %v1139, 7
        %v1141 = vsub.s32 %v1138, %v1140
        %v1142 = vrot.slane %v1135, %v1141
        %v1143 = vcombine.low %v1092, %v1108
        %v1145 = vunpack.c.l.s4 1983009808
        %v1146 = vunpack.c.0.s8 %v1145
        %v1147 = vlaneseq
        %v1148 = vshrl.u32 %v1147, 7
        %v1149 = vsub.s32 %v1146, %v1148
        %v1150 = vrot.slane %v1143, %v1149
        %v1151 = vcombine.low %v1142, %v1150
        %v1153 = vunpack.c.l.s4 1934713408
        %v1154 = vunpack.c.0.s8 %v1153
        %v1155 = vlaneseq
        %v1156 = vshrl.u32 %v1155, 7
        %v1157 = vsub.s32 %v1154, %v1156
        %v1158 = vrot.slane %v1151, %v1157
        %v1159 = vcombine.high %v1158, 0
        %v1162 = vpack.i.b16 %v1158, %v1133
        %v1163 = vshrl.u32 %v1133, 16
        %v1164 = vshrl.u32 %v1158, 16
        %v1165 = vpack.i.b16 %v1164, %v1163
        %v1168 = vpack.i.b16 %v1159, %v1134
        %v1169 = vshrl.u32 %v1134, 16
        %v1170 = vshrl.u32 %v1159, 16
        %v1171 = vpack.i.b16 %v1170, %v1169
        %v1172 = vld [vmem:[%s513] sm:$0xf]
        %v1173 = vld [vmem:[%s513 + $0x4] sm:$0xf]
        %v1174 = vld [vmem:[%s513 + $0x8] sm:$0xf]
        %v1175 = vld [vmem:[%s513 + $0xc] sm:$0xf]
        %v1176 = vunpack.c.l.bf16 %v1172
        %v1177 = vunpack.c.l.bf16 %v1173
        %v1178 = vunpack.c.l.bf16 %v1174
        %v1179 = vunpack.c.l.bf16 %v1175
        %vm1180 = vcmask 64512
        %v1182 = vsel %vm1180, %v823, 0
        %v1185 = vsel %vm1180, %v992, 0
        %1187 = vmatprep.subr.bf16.mxu0 0
        %1188 = vmatpush1.bf16.xpose.msra.mxu0 %v1185
        %1189 = vmatprep.subr.bf16.mxu0 0
        %1190 = vmatpush1.bf16.xpose.msra.mxu0 0
        %1191 = vmatprep.subr.bf16.mxu0 0
        %1192 = vmatpush1.bf16.xpose.msra.mxu0 0
        %1193 = vmatprep.subr.bf16.mxu0 0
        %1194 = vmatpush1.bf16.xpose.msra.mxu0 0
        %1195 = vmatprep.subr.bf16.mxu0 0
        %1196 = vmatpush1.bf16.xpose.msra.mxu0 0
        %1197 = vmatprep.subr.bf16.mxu0 0
        %1198 = vmatpush1.bf16.xpose.msra.mxu0 0
        %1199 = vmatprep.subr.bf16.mxu0 0
        %1200 = vmatpush1.bf16.xpose.msra.mxu0 0
        %1201 = vmatprep.subr.bf16.mxu0 0
        %1202 = vmatpush1.bf16.xpose.msra.mxu0 0
        %1203 = vmatprep.subr.bf16.mxu0 0
        %1204 = vmatpush1.bf16.xpose.msra.mxu0 0
        %1205 = vmatprep.subr.bf16.mxu0 0
        %1206 = vmatpush1.bf16.xpose.msra.mxu0 0
        %1207 = vmatprep.subr.bf16.mxu0 0
        %1208 = vmatpush1.bf16.xpose.msra.mxu0 0
        %1209 = vmatprep.subr.bf16.mxu0 0
        %1210 = vmatpush1.bf16.xpose.msra.mxu0 0
        %1211 = vmatprep.subr.bf16.mxu0 0
        %1212 = vmatpush1.bf16.xpose.msra.mxu0 0
        %1213 = vmatprep.subr.bf16.mxu0 0
        %1214 = vmatpush1.bf16.xpose.msra.mxu0 0
        %1215 = vmatprep.subr.bf16.mxu0 0
        %1216 = vmatpush1.bf16.xpose.msra.mxu0 0
        %1217 = vmatprep.subr.bf16.mxu0 0
        %1218 = vmatpush1.bf16.xpose.msra.mxu0 0
        %1219 = vmatprep.mubr.bf16.mxu0 0
        %1220 = vmatmul.mubr.bf16.gmra.mrb[0].mxu0 %v1182
        %v1221 = vpop.f32.mrb[0].mxu0
        %v1222 = vadd.f32 %v1176, %v1221
        %v1223 = vpop.f32.mrb[0].mxu0
        %v1224 = vpop.f32.mrb[0].mxu0
        %v1225 = vpop.f32.mrb[0].mxu0
        %1226 = vdwg.mxu0
        %v1228 = vsel %vm1180, %v826, 0
        %v1231 = vsel %vm1180, %v995, 0
        %1233 = vmatprep.subr.bf16.mxu0 0
        %1234 = vmatpush1.bf16.xpose.msra.mxu0 %v1231
        %1235 = vmatprep.subr.bf16.mxu0 0
        %1236 = vmatpush1.bf16.xpose.msra.mxu0 0
        %1237 = vmatprep.subr.bf16.mxu0 0
        %1238 = vmatpush1.bf16.xpose.msra.mxu0 0
        %1239 = vmatprep.subr.bf16.mxu0 0
        %1240 = vmatpush1.bf16.xpose.msra.mxu0 0
        %1241 = vmatprep.subr.bf16.mxu0 0
        %1242 = vmatpush1.bf16.xpose.msra.mxu0 0
        %1243 = vmatprep.subr.bf16.mxu0 0
        %1244 = vmatpush1.bf16.xpose.msra.mxu0 0
        %1245 = vmatprep.subr.bf16.mxu0 0
        %1246 = vmatpush1.bf16.xpose.msra.mxu0 0
        %1247 = vmatprep.subr.bf16.mxu0 0
        %1248 = vmatpush1.bf16.xpose.msra.mxu0 0
        %1249 = vmatprep.subr.bf16.mxu0 0
        %1250 = vmatpush1.bf16.xpose.msra.mxu0 0
        %1251 = vmatprep.subr.bf16.mxu0 0
        %1252 = vmatpush1.bf16.xpose.msra.mxu0 0
        %1253 = vmatprep.subr.bf16.mxu0 0
        %1254 = vmatpush1.bf16.xpose.msra.mxu0 0
        %1255 = vmatprep.subr.bf16.mxu0 0
        %1256 = vmatpush1.bf16.xpose.msra.mxu0 0
        %1257 = vmatprep.subr.bf16.mxu0 0
        %1258 = vmatpush1.bf16.xpose.msra.mxu0 0
        %1259 = vmatprep.subr.bf16.mxu0 0
        %1260 = vmatpush1.bf16.xpose.msra.mxu0 0
        %1261 = vmatprep.subr.bf16.mxu0 0
        %1262 = vmatpush1.bf16.xpose.msra.mxu0 0
        %1263 = vmatprep.subr.bf16.mxu0 0
        %1264 = vmatpush1.bf16.xpose.msra.mxu0 0
        %1265 = vmatprep.mubr.bf16.mxu0 0
        %1266 = vmatmul.mubr.bf16.gmra.mrb[0].mxu0 %v1228
        %v1267 = vpop.f32.mrb[0].mxu0
        %v1268 = vadd.f32 %v1177, %v1267
        %v1269 = vpop.f32.mrb[0].mxu0
        %v1270 = vpop.f32.mrb[0].mxu0
        %v1271 = vpop.f32.mrb[0].mxu0
        %1272 = vdwg.mxu0
        %v1274 = vsel %vm1180, %v829, 0
        %v1277 = vsel %vm1180, %v998, 0
        %1279 = vmatprep.subr.bf16.mxu0 0
        %1280 = vmatpush1.bf16.xpose.msra.mxu0 %v1277
        %1281 = vmatprep.subr.bf16.mxu0 0
        %1282 = vmatpush1.bf16.xpose.msra.mxu0 0
        %1283 = vmatprep.subr.bf16.mxu0 0
        %1284 = vmatpush1.bf16.xpose.msra.mxu0 0
        %1285 = vmatprep.subr.bf16.mxu0 0
        %1286 = vmatpush1.bf16.xpose.msra.mxu0 0
        %1287 = vmatprep.subr.bf16.mxu0 0
        %1288 = vmatpush1.bf16.xpose.msra.mxu0 0
        %1289 = vmatprep.subr.bf16.mxu0 0
        %1290 = vmatpush1.bf16.xpose.msra.mxu0 0
        %1291 = vmatprep.subr.bf16.mxu0 0
        %1292 = vmatpush1.bf16.xpose.msra.mxu0 0
        %1293 = vmatprep.subr.bf16.mxu0 0
        %1294 = vmatpush1.bf16.xpose.msra.mxu0 0
        %1295 = vmatprep.subr.bf16.mxu0 0
        %1296 = vmatpush1.bf16.xpose.msra.mxu0 0
        %1297 = vmatprep.subr.bf16.mxu0 0
        %1298 = vmatpush1.bf16.xpose.msra.mxu0 0
        %1299 = vmatprep.subr.bf16.mxu0 0
        %1300 = vmatpush1.bf16.xpose.msra.mxu0 0
        %1301 = vmatprep.subr.bf16.mxu0 0
        %1302 = vmatpush1.bf16.xpose.msra.mxu0 0
        %1303 = vmatprep.subr.bf16.mxu0 0
        %1304 = vmatpush1.bf16.xpose.msra.mxu0 0
        %1305 = vmatprep.subr.bf16.mxu0 0
        %1306 = vmatpush1.bf16.xpose.msra.mxu0 0
        %1307 = vmatprep.subr.bf16.mxu0 0
        %1308 = vmatpush1.bf16.xpose.msra.mxu0 0
        %1309 = vmatprep.subr.bf16.mxu0 0
        %1310 = vmatpush1.bf16.xpose.msra.mxu0 0
        %1311 = vmatprep.mubr.bf16.mxu0 0
        %1312 = vmatmul.mubr.bf16.gmra.mrb[0].mxu0 %v1274
        %v1313 = vpop.f32.mrb[0].mxu0
        %v1314 = vadd.f32 %v1178, %v1313
        %v1315 = vpop.f32.mrb[0].mxu0
        %v1316 = vpop.f32.mrb[0].mxu0
        %v1317 = vpop.f32.mrb[0].mxu0
        %1318 = vdwg.mxu0
        %v1320 = vsel %vm1180, %v832, 0
        %v1323 = vsel %vm1180, %v1001, 0
        %1325 = vmatprep.subr.bf16.mxu0 0
        %1326 = vmatpush1.bf16.xpose.msra.mxu0 %v1323
        %1327 = vmatprep.subr.bf16.mxu0 0
        %1328 = vmatpush1.bf16.xpose.msra.mxu0 0
        %1329 = vmatprep.subr.bf16.mxu0 0
        %1330 = vmatpush1.bf16.xpose.msra.mxu0 0
        %1331 = vmatprep.subr.bf16.mxu0 0
        %1332 = vmatpush1.bf16.xpose.msra.mxu0 0
        %1333 = vmatprep.subr.bf16.mxu0 0
        %1334 = vmatpush1.bf16.xpose.msra.mxu0 0
        %1335 = vmatprep.subr.bf16.mxu0 0
        %1336 = vmatpush1.bf16.xpose.msra.mxu0 0
        %1337 = vmatprep.subr.bf16.mxu0 0
        %1338 = vmatpush1.bf16.xpose.msra.mxu0 0
        %1339 = vmatprep.subr.bf16.mxu0 0
        %1340 = vmatpush1.bf16.xpose.msra.mxu0 0
        %1341 = vmatprep.subr.bf16.mxu0 0
        %1342 = vmatpush1.bf16.xpose.msra.mxu0 0
        %1343 = vmatprep.subr.bf16.mxu0 0
        %1344 = vmatpush1.bf16.xpose.msra.mxu0 0
        %1345 = vmatprep.subr.bf16.mxu0 0
        %1346 = vmatpush1.bf16.xpose.msra.mxu0 0
        %1347 = vmatprep.subr.bf16.mxu0 0
        %1348 = vmatpush1.bf16.xpose.msra.mxu0 0
        %1349 = vmatprep.subr.bf16.mxu0 0
        %1350 = vmatpush1.bf16.xpose.msra.mxu0 0
        %1351 = vmatprep.subr.bf16.mxu0 0
        %1352 = vmatpush1.bf16.xpose.msra.mxu0 0
        %1353 = vmatprep.subr.bf16.mxu0 0
        %1354 = vmatpush1.bf16.xpose.msra.mxu0 0
        %1355 = vmatprep.subr.bf16.mxu0 0
        %1356 = vmatpush1.bf16.xpose.msra.mxu0 0
        %1357 = vmatprep.mubr.bf16.mxu0 0
        %1358 = vmatmul.mubr.bf16.gmra.mrb[0].mxu0 %v1320
        %v1359 = vpop.f32.mrb[0].mxu0
        %v1360 = vadd.f32 %v1179, %v1359
        %v1361 = vpop.f32.mrb[0].mxu0
        %v1362 = vpop.f32.mrb[0].mxu0
        %v1363 = vpop.f32.mrb[0].mxu0
        %1364 = vdwg.mxu0
        %v1365 = vld [vmem:[%s509] sm:$0x1]
        %v1367 = vlaneseq
        %v1368 = vshrl.u32 %v1367, 7
        %v1369 = vsub.s32 0, %v1368
        %v1370 = vrot.slane %v1365, %v1369
        %v1372 = vadd.f32 %v1222, %v1370
        %v1373 = vadd.f32 %v1268, %v1370
        %v1374 = vadd.f32 %v1314, %v1370
        %v1375 = vadd.f32 %v1360, %v1370
        %v1376 = vsel %vm1180, %v1372, -inf
        %1377 = vmax.xlane.f32.xlu0 %v1376
        %v1378 = vpop.xlane.xlu0 %1377
        %v1379 = vsel %vm1180, %v1373, -inf
        %1380 = vmax.xlane.f32.xlu0 %v1379
        %v1381 = vpop.xlane.xlu0 %1380
        %v1382 = vsel %vm1180, %v1374, -inf
        %1383 = vmax.xlane.f32.xlu0 %v1382
        %v1384 = vpop.xlane.xlu0 %1383
        %v1385 = vsel %vm1180, %v1375, -inf
        %1386 = vmax.xlane.f32.xlu0 %v1385
        %v1387 = vpop.xlane.xlu0 %1386
        %v1388 = vsub.f32 %v1372, %v1378
        %v1389 = vsub.f32 %v1373, %v1381
        %v1390 = vsub.f32 %v1374, %v1384
        %v1391 = vsub.f32 %v1375, %v1387
        %v1392 = vmul.f32 %v1388, 1.442695
        %v1393 = vpow.pop %v1392
        %v1394 = vmul.f32 %v1389, 1.442695
        %v1395 = vpow.pop %v1394
        %v1396 = vmul.f32 %v1390, 1.442695
        %v1397 = vpow.pop %v1396
        %v1398 = vmul.f32 %v1391, 1.442695
        %v1399 = vpow.pop %v1398
        %v1400 = vpack.c.bf16 %v1393, %v1393
        %v1401 = vpack.c.bf16 %v1395, %v1395
        %v1402 = vpack.c.bf16 %v1397, %v1397
        %v1403 = vpack.c.bf16 %v1399, %v1399
        %v1404 = vunpack.c.l.bf16 %v1400
        %v1405 = vunpack.c.l.bf16 %v1401
        %v1406 = vunpack.c.l.bf16 %v1402
        %v1407 = vunpack.c.l.bf16 %v1403
        %v1408 = vsel %vm1180, %v1404, 0.0
        %1409 = vadd.xlane.f32.xlu0 %v1408
        %v1410 = vpop.xlane.xlu0 %1409
        %v1411 = vsel %vm1180, %v1405, 0.0
        %1412 = vadd.xlane.f32.xlu0 %v1411
        %v1413 = vpop.xlane.xlu0 %1412
        %v1414 = vsel %vm1180, %v1406, 0.0
        %1415 = vadd.xlane.f32.xlu0 %v1414
        %v1416 = vpop.xlane.xlu0 %1415
        %v1417 = vsel %vm1180, %v1407, 0.0
        %1418 = vadd.xlane.f32.xlu0 %v1417
        %v1419 = vpop.xlane.xlu0 %1418
        %v1421 = vsel %vm1180, %v1400, 0
        %vm1423 = vcmask 1043456
        %v1425 = vsel %vm1423, %v1162, 0
        %1427 = vmatprep.subr.bf16.mxu0 0
        %1428 = vmatpush1.bf16.msra.mxu0 %v1425
        %1429 = vmatprep.subr.bf16.mxu0 0
        %1430 = vmatpush1.bf16.msra.mxu0 0
        %1431 = vmatprep.subr.bf16.mxu0 0
        %1432 = vmatpush1.bf16.msra.mxu0 0
        %1433 = vmatprep.subr.bf16.mxu0 0
        %1434 = vmatpush1.bf16.msra.mxu0 0
        %1435 = vmatprep.subr.bf16.mxu0 0
        %1436 = vmatpush1.bf16.msra.mxu0 0
        %1437 = vmatprep.subr.bf16.mxu0 0
        %1438 = vmatpush1.bf16.msra.mxu0 0
        %1439 = vmatprep.subr.bf16.mxu0 0
        %1440 = vmatpush1.bf16.msra.mxu0 0
        %1441 = vmatprep.subr.bf16.mxu0 0
        %1442 = vmatpush1.bf16.msra.mxu0 0
        %1443 = vmatprep.subr.bf16.mxu0 0
        %1444 = vmatpush1.bf16.msra.mxu0 0
        %1445 = vmatprep.subr.bf16.mxu0 0
        %1446 = vmatpush1.bf16.msra.mxu0 0
        %1447 = vmatprep.subr.bf16.mxu0 0
        %1448 = vmatpush1.bf16.msra.mxu0 0
        %1449 = vmatprep.subr.bf16.mxu0 0
        %1450 = vmatpush1.bf16.msra.mxu0 0
        %1451 = vmatprep.subr.bf16.mxu0 0
        %1452 = vmatpush1.bf16.msra.mxu0 0
        %1453 = vmatprep.subr.bf16.mxu0 0
        %1454 = vmatpush1.bf16.msra.mxu0 0
        %1455 = vmatprep.subr.bf16.mxu0 0
        %1456 = vmatpush1.bf16.msra.mxu0 0
        %1457 = vmatprep.subr.bf16.mxu0 0
        %1458 = vmatpush1.bf16.msra.mxu0 0
        %1459 = vmatprep.mubr.bf16.mxu0 0
        %1460 = vmatmul.mubr.bf16.gmra.mrb[0].mxu0 %v1421
        %v1461 = vpop.f32.mrb[0].mxu0
        %v1462 = vadd.f32 0.0, %v1461
        %v1463 = vpop.f32.mrb[0].mxu0
        %v1464 = vpop.f32.mrb[0].mxu0
        %v1465 = vpop.f32.mrb[0].mxu0
        %1466 = vdwg.mxu0
        %v1468 = vsel %vm1180, %v1401, 0
        %v1471 = vsel %vm1423, %v1165, 0
        %1473 = vmatprep.subr.bf16.mxu0 0
        %1474 = vmatpush1.bf16.msra.mxu0 %v1471
        %1475 = vmatprep.subr.bf16.mxu0 0
        %1476 = vmatpush1.bf16.msra.mxu0 0
        %1477 = vmatprep.subr.bf16.mxu0 0
        %1478 = vmatpush1.bf16.msra.mxu0 0
        %1479 = vmatprep.subr.bf16.mxu0 0
        %1480 = vmatpush1.bf16.msra.mxu0 0
        %1481 = vmatprep.subr.bf16.mxu0 0
        %1482 = vmatpush1.bf16.msra.mxu0 0
        %1483 = vmatprep.subr.bf16.mxu0 0
        %1484 = vmatpush1.bf16.msra.mxu0 0
        %1485 = vmatprep.subr.bf16.mxu0 0
        %1486 = vmatpush1.bf16.msra.mxu0 0
        %1487 = vmatprep.subr.bf16.mxu0 0
        %1488 = vmatpush1.bf16.msra.mxu0 0
        %1489 = vmatprep.subr.bf16.mxu0 0
        %1490 = vmatpush1.bf16.msra.mxu0 0
        %1491 = vmatprep.subr.bf16.mxu0 0
        %1492 = vmatpush1.bf16.msra.mxu0 0
        %1493 = vmatprep.subr.bf16.mxu0 0
        %1494 = vmatpush1.bf16.msra.mxu0 0
        %1495 = vmatprep.subr.bf16.mxu0 0
        %1496 = vmatpush1.bf16.msra.mxu0 0
        %1497 = vmatprep.subr.bf16.mxu0 0
        %1498 = vmatpush1.bf16.msra.mxu0 0
        %1499 = vmatprep.subr.bf16.mxu0 0
        %1500 = vmatpush1.bf16.msra.mxu0 0
        %1501 = vmatprep.subr.bf16.mxu0 0
        %1502 = vmatpush1.bf16.msra.mxu0 0
        %1503 = vmatprep.subr.bf16.mxu0 0
        %1504 = vmatpush1.bf16.msra.mxu0 0
        %1505 = vmatprep.mubr.bf16.mxu0 0
        %1506 = vmatmul.mubr.bf16.gmra.mrb[0].mxu0 %v1468
        %v1507 = vpop.f32.mrb[0].mxu0
        %v1508 = vadd.f32 0.0, %v1507
        %v1509 = vpop.f32.mrb[0].mxu0
        %v1510 = vpop.f32.mrb[0].mxu0
        %v1511 = vpop.f32.mrb[0].mxu0
        %1512 = vdwg.mxu0
        %v1514 = vsel %vm1180, %v1402, 0
        %v1517 = vsel %vm1423, %v1168, 0
        %1519 = vmatprep.subr.bf16.mxu0 0
        %1520 = vmatpush1.bf16.msra.mxu0 %v1517
        %1521 = vmatprep.subr.bf16.mxu0 0
        %1522 = vmatpush1.bf16.msra.mxu0 0
        %1523 = vmatprep.subr.bf16.mxu0 0
        %1524 = vmatpush1.bf16.msra.mxu0 0
        %1525 = vmatprep.subr.bf16.mxu0 0
        %1526 = vmatpush1.bf16.msra.mxu0 0
        %1527 = vmatprep.subr.bf16.mxu0 0
        %1528 = vmatpush1.bf16.msra.mxu0 0
        %1529 = vmatprep.subr.bf16.mxu0 0
        %1530 = vmatpush1.bf16.msra.mxu0 0
        %1531 = vmatprep.subr.bf16.mxu0 0
        %1532 = vmatpush1.bf16.msra.mxu0 0
        %1533 = vmatprep.subr.bf16.mxu0 0
        %1534 = vmatpush1.bf16.msra.mxu0 0
        %1535 = vmatprep.subr.bf16.mxu0 0
        %1536 = vmatpush1.bf16.msra.mxu0 0
        %1537 = vmatprep.subr.bf16.mxu0 0
        %1538 = vmatpush1.bf16.msra.mxu0 0
        %1539 = vmatprep.subr.bf16.mxu0 0
        %1540 = vmatpush1.bf16.msra.mxu0 0
        %1541 = vmatprep.subr.bf16.mxu0 0
        %1542 = vmatpush1.bf16.msra.mxu0 0
        %1543 = vmatprep.subr.bf16.mxu0 0
        %1544 = vmatpush1.bf16.msra.mxu0 0
        %1545 = vmatprep.subr.bf16.mxu0 0
        %1546 = vmatpush1.bf16.msra.mxu0 0
        %1547 = vmatprep.subr.bf16.mxu0 0
        %1548 = vmatpush1.bf16.msra.mxu0 0
        %1549 = vmatprep.subr.bf16.mxu0 0
        %1550 = vmatpush1.bf16.msra.mxu0 0
        %1551 = vmatprep.mubr.bf16.mxu0 0
        %1552 = vmatmul.mubr.bf16.gmra.mrb[0].mxu0 %v1514
        %v1553 = vpop.f32.mrb[0].mxu0
        %v1554 = vadd.f32 0.0, %v1553
        %v1555 = vpop.f32.mrb[0].mxu0
        %v1556 = vpop.f32.mrb[0].mxu0
        %v1557 = vpop.f32.mrb[0].mxu0
        %1558 = vdwg.mxu0
        %v1560 = vsel %vm1180, %v1403, 0
        %v1563 = vsel %vm1423, %v1171, 0
        %1565 = vmatprep.subr.bf16.mxu0 0
        %1566 = vmatpush1.bf16.msra.mxu0 %v1563
        %1567 = vmatprep.subr.bf16.mxu0 0
        %1568 = vmatpush1.bf16.msra.mxu0 0
        %1569 = vmatprep.subr.bf16.mxu0 0
        %1570 = vmatpush1.bf16.msra.mxu0 0
        %1571 = vmatprep.subr.bf16.mxu0 0
        %1572 = vmatpush1.bf16.msra.mxu0 0
        %1573 = vmatprep.subr.bf16.mxu0 0
        %1574 = vmatpush1.bf16.msra.mxu0 0
        %1575 = vmatprep.subr.bf16.mxu0 0
        %1576 = vmatpush1.bf16.msra.mxu0 0
        %1577 = vmatprep.subr.bf16.mxu0 0
        %1578 = vmatpush1.bf16.msra.mxu0 0
        %1579 = vmatprep.subr.bf16.mxu0 0
        %1580 = vmatpush1.bf16.msra.mxu0 0
        %1581 = vmatprep.subr.bf16.mxu0 0
        %1582 = vmatpush1.bf16.msra.mxu0 0
        %1583 = vmatprep.subr.bf16.mxu0 0
        %1584 = vmatpush1.bf16.msra.mxu0 0
        %1585 = vmatprep.subr.bf16.mxu0 0
        %1586 = vmatpush1.bf16.msra.mxu0 0
        %1587 = vmatprep.subr.bf16.mxu0 0
        %1588 = vmatpush1.bf16.msra.mxu0 0
        %1589 = vmatprep.subr.bf16.mxu0 0
        %1590 = vmatpush1.bf16.msra.mxu0 0
        %1591 = vmatprep.subr.bf16.mxu0 0
        %1592 = vmatpush1.bf16.msra.mxu0 0
        %1593 = vmatprep.subr.bf16.mxu0 0
        %1594 = vmatpush1.bf16.msra.mxu0 0
        %1595 = vmatprep.subr.bf16.mxu0 0
        %1596 = vmatpush1.bf16.msra.mxu0 0
        %1597 = vmatprep.mubr.bf16.mxu0 0
        %1598 = vmatmul.mubr.bf16.gmra.mrb[0].mxu0 %v1560
        %v1599 = vpop.f32.mrb[0].mxu0
        %v1600 = vadd.f32 0.0, %v1599
        %v1601 = vpop.f32.mrb[0].mxu0
        %v1602 = vpop.f32.mrb[0].mxu0
        %v1603 = vpop.f32.mrb[0].mxu0
        %1604 = vdwg.mxu0
        %v1605 = vrcp.pop %v1410
        %v1606 = vrcp.pop %v1413
        %v1607 = vrcp.pop %v1416
        %v1608 = vrcp.pop %v1419
        %v1609 = vmul.f32 %v1462, %v1605
        %v1610 = vmul.f32 %v1508, %v1606
        %v1611 = vmul.f32 %v1554, %v1607
        %v1612 = vmul.f32 %v1600, %v1608
        %v1613 = vcombine.low %v1609, %v1611
        %v1614 = vcombine.high %v1609, %v1611
        %v1616 = vunpack.c.l.s4 1983009808
        %v1617 = vunpack.c.0.s8 %v1616
        %v1618 = vlaneseq
        %v1619 = vshrl.u32 %v1618, 7
        %v1620 = vsub.s32 %v1617, %v1619
        %v1621 = vrot.slane %v1613, %v1620
        %v1623 = vunpack.c.l.s4 1983009808
        %v1624 = vunpack.c.0.s8 %v1623
        %v1625 = vlaneseq
        %v1626 = vshrl.u32 %v1625, 7
        %v1627 = vsub.s32 %v1624, %v1626
        %v1628 = vrot.slane %v1614, %v1627
        %v1629 = vcombine.low %v1610, %v1612
        %v1630 = vcombine.high %v1610, %v1612
        %v1632 = vunpack.c.l.s4 1983009808
        %v1633 = vunpack.c.0.s8 %v1632
        %v1634 = vlaneseq
        %v1635 = vshrl.u32 %v1634, 7
        %v1636 = vsub.s32 %v1633, %v1635
        %v1637 = vrot.slane %v1629, %v1636
        %v1639 = vunpack.c.l.s4 1983009808
        %v1640 = vunpack.c.0.s8 %v1639
        %v1641 = vlaneseq
        %v1642 = vshrl.u32 %v1641, 7
        %v1643 = vsub.s32 %v1640, %v1642
        %v1644 = vrot.slane %v1630, %v1643
        %v1645 = vcombine.low %v1621, %v1637
        %v1646 = vcombine.high %v1621, %v1637
        %v1648 = vunpack.c.l.s4 1934713408
        %v1649 = vunpack.c.0.s8 %v1648
        %v1650 = vlaneseq
        %v1651 = vshrl.u32 %v1650, 7
        %v1652 = vsub.s32 %v1649, %v1651
        %v1653 = vrot.slane %v1645, %v1652
        %v1655 = vunpack.c.l.s4 1934713408
        %v1656 = vunpack.c.0.s8 %v1655
        %v1657 = vlaneseq
        %v1658 = vshrl.u32 %v1657, 7
        %v1659 = vsub.s32 %v1656, %v1658
        %v1660 = vrot.slane %v1646, %v1659
        %v1661 = vcombine.low %v1628, %v1644
        %v1662 = vcombine.high %v1628, %v1644
        %v1664 = vunpack.c.l.s4 1934713408
        %v1665 = vunpack.c.0.s8 %v1664
        %v1666 = vlaneseq
        %v1667 = vshrl.u32 %v1666, 7
        %v1668 = vsub.s32 %v1665, %v1667
        %v1669 = vrot.slane %v1661, %v1668
        %v1671 = vunpack.c.l.s4 1934713408
        %v1672 = vunpack.c.0.s8 %v1671
        %v1673 = vlaneseq
        %v1674 = vshrl.u32 %v1673, 7
        %v1675 = vsub.s32 %v1672, %v1674
        %v1676 = vrot.slane %v1662, %v1675
        %v1677 = vcombine.high %v1653, 0.0
        %v1678 = vcombine.high %v1660, 0.0
        %v1679 = vcombine.high %v1669, 0.0
        %v1680 = vcombine.high %v1676, 0.0
        %v1681 = vcombine.low %v1653, %v1660
        %v1683 = vunpack.c.l.s4 1983009808
        %v1684 = vunpack.c.0.s8 %v1683
        %v1685 = vlaneseq
        %v1686 = vshrl.u32 %v1685, 7
        %v1687 = vsub.s32 %v1684, %v1686
        %v1688 = vrot.slane %v1681, %v1687
        %v1689 = vcombine.low %v1677, %v1678
        %v1691 = vunpack.c.l.s4 1983009808
        %v1692 = vunpack.c.0.s8 %v1691
        %v1693 = vlaneseq
        %v1694 = vshrl.u32 %v1693, 7
        %v1695 = vsub.s32 %v1692, %v1694
        %v1696 = vrot.slane %v1689, %v1695
        %v1697 = vcombine.low %v1669, %v1676
        %v1699 = vunpack.c.l.s4 1983009808
        %v1700 = vunpack.c.0.s8 %v1699
        %v1701 = vlaneseq
        %v1702 = vshrl.u32 %v1701, 7
        %v1703 = vsub.s32 %v1700, %v1702
        %v1704 = vrot.slane %v1697, %v1703
        %v1705 = vcombine.low %v1679, %v1680
        %v1707 = vunpack.c.l.s4 1983009808
        %v1708 = vunpack.c.0.s8 %v1707
        %v1709 = vlaneseq
        %v1710 = vshrl.u32 %v1709, 7
        %v1711 = vsub.s32 %v1708, %v1710
        %v1712 = vrot.slane %v1705, %v1711
        %v1713 = vcombine.low %v1688, %v1696
        %v1714 = vcombine.high %v1688, %v1696
        %v1716 = vunpack.c.l.s4 1934713408
        %v1717 = vunpack.c.0.s8 %v1716
        %v1718 = vlaneseq
        %v1719 = vshrl.u32 %v1718, 7
        %v1720 = vsub.s32 %v1717, %v1719
        %v1721 = vrot.slane %v1713, %v1720
        %v1723 = vunpack.c.l.s4 1934713408
        %v1724 = vunpack.c.0.s8 %v1723
        %v1725 = vlaneseq
        %v1726 = vshrl.u32 %v1725, 7
        %v1727 = vsub.s32 %v1724, %v1726
        %v1728 = vrot.slane %v1714, %v1727
        %v1729 = vcombine.low %v1704, %v1712
        %v1730 = vcombine.high %v1704, %v1712
        %v1732 = vunpack.c.l.s4 1934713408
        %v1733 = vunpack.c.0.s8 %v1732
        %v1734 = vlaneseq
        %v1735 = vshrl.u32 %v1734, 7
        %v1736 = vsub.s32 %v1733, %v1735
        %v1737 = vrot.slane %v1729, %v1736
        %v1739 = vunpack.c.l.s4 1934713408
        %v1740 = vunpack.c.0.s8 %v1739
        %v1741 = vlaneseq
        %v1742 = vshrl.u32 %v1741, 7
        %v1743 = vsub.s32 %v1740, %v1742
        %v1744 = vrot.slane %v1730, %v1743
        %v1745 = vcombine.low %v1721, %v1737
        %v1746 = vcombine.high %v1721, %v1737
        %v1747 = vcombine.low %v1728, %v1744
        %v1748 = vcombine.high %v1728, %v1744
        %1750 = vrot.lane.b32.xlu0 %v1746, 8
        %v1751 = vpop.permute.xlu0 %1750
        %1754 = vrot.lane.b32.xlu0 %v1747, 16
        %v1755 = vpop.permute.xlu0 %1754
        %1758 = vrot.lane.b32.xlu0 %v1748, 24
        %v1759 = vpop.permute.xlu0 %1758
        %v1761 = vsel %vm1180, %v1745, %v1751
        %vm1762 = vcmask 130048
        %v1763 = vsel %vm1762, %v1761, %v1755
        %vm1764 = vcmask 195584
        %v1765 = vsel %vm1764, %v1763, %v1759
        %v1766 = vpack.c.bf16 %v1765, %v1765
        %v1767 = vld [vmem:[#allocation7] sm:$0xf]
        %v1768 = vld [vmem:[#allocation7 + $0x4] sm:$0xf]
        %v1769 = vld [vmem:[#allocation7 + $0x8] sm:$0xf]
        %v1770 = vld [vmem:[#allocation7 + $0xc] sm:$0xf]
        %v1775 = vunpack.c.l.b16 %v1767
        %v1776 = vunpack.c.l.b16 %v1768
        %v1777 = vunpack.c.l.b16 %v1769
        %v1778 = vunpack.c.l.b16 %v1770
        %v1779 = vpack.c.b16 %v1776, %v1775
        %v1780 = vpack.c.b16 %v1778, %v1777
        %v1784 = vsel %vm519, %v1766, 0
        %1786 = vmatprep.subr.bf16.mxu0 0
        %1787 = vmatpush1.bf16.msra.mxu0 %v1779
        %1788 = vmatprep.subr.bf16.mxu0 0
        %1789 = vmatpush1.bf16.msra.mxu0 %v1780
        %1790 = vmatprep.subr.bf16.mxu0 0
        %1791 = vmatpush1.bf16.msra.mxu0 0
        %1792 = vmatprep.subr.bf16.mxu0 0
        %1793 = vmatpush1.bf16.msra.mxu0 0
        %1794 = vmatprep.subr.bf16.mxu0 0
        %1795 = vmatpush1.bf16.msra.mxu0 0
        %1796 = vmatprep.subr.bf16.mxu0 0
        %1797 = vmatpush1.bf16.msra.mxu0 0
        %1798 = vmatprep.subr.bf16.mxu0 0
        %1799 = vmatpush1.bf16.msra.mxu0 0
        %1800 = vmatprep.subr.bf16.mxu0 0
        %1801 = vmatpush1.bf16.msra.mxu0 0
        %1802 = vmatprep.subr.bf16.mxu0 0
        %1803 = vmatpush1.bf16.msra.mxu0 0
        %1804 = vmatprep.subr.bf16.mxu0 0
        %1805 = vmatpush1.bf16.msra.mxu0 0
        %1806 = vmatprep.subr.bf16.mxu0 0
        %1807 = vmatpush1.bf16.msra.mxu0 0
        %1808 = vmatprep.subr.bf16.mxu0 0
        %1809 = vmatpush1.bf16.msra.mxu0 0
        %1810 = vmatprep.subr.bf16.mxu0 0
        %1811 = vmatpush1.bf16.msra.mxu0 0
        %1812 = vmatprep.subr.bf16.mxu0 0
        %1813 = vmatpush1.bf16.msra.mxu0 0
        %1814 = vmatprep.subr.bf16.mxu0 0
        %1815 = vmatpush1.bf16.msra.mxu0 0
        %1816 = vmatprep.subr.bf16.mxu0 0
        %1817 = vmatpush1.bf16.msra.mxu0 0
        %1818 = vmatprep.mubr.bf16.mxu0 0
        %1819 = vmatmul.mubr.bf16.gmra.mrb[0].mxu0 %v1784
        %v1820 = vpop.f32.mrb[0].mxu0
        %v1821 = vadd.f32 0.0, %v1820
        %v1822 = vpop.f32.mrb[0].mxu0
        %v1823 = vpop.f32.mrb[0].mxu0
        %v1824 = vpop.f32.mrb[0].mxu0
        %1825 = vdwg.mxu0
        %v1826 = vadd.f32 %v516, %v1821
        %v1827 = vld [vmem:[%s10] sm:$0x1]
        %v1828 = vmul.f32 %v1826, %v1826
        %v1829 = vsel %vm519, %v1828, 0.0
        %1830 = vadd.xlane.f32.xlu0 %v1829
        %v1831 = vpop.xlane.xlu0 %1830
        %v1832 = vmul.f32 %v1831, %v523
        %v1833 = vadd.f32 %v1832, 1e-06
        %v1834 = vrsqrt.pop %v1833
        %v1835 = vmul.f32 %v1826, %v1834
        %v1837 = vlaneseq
        %v1838 = vshrl.u32 %v1837, 7
        %v1839 = vsub.s32 0, %v1838
        %v1840 = vrot.slane %v1827, %v1839
        %v1842 = vmul.f32 %v1835, %v1840
        %v1843 = vpack.c.bf16 %v1842, %v1842
        %v1844 = vld [vmem:[#allocation8] sm:$0xf]
        %v1845 = vld [vmem:[#allocation8 + $0x4] sm:$0xf]
        %v1846 = vld [vmem:[#allocation8 + $0x8] sm:$0xf]
        %v1847 = vld [vmem:[#allocation8 + $0xc] sm:$0xf]
        %v1852 = vunpack.c.l.b16 %v1844
        %v1853 = vunpack.c.l.b16 %v1845
        %v1854 = vunpack.c.l.b16 %v1846
        %v1855 = vunpack.c.l.b16 %v1847
        %v1856 = vpack.c.b16 %v1853, %v1852
        %v1857 = vpack.c.b16 %v1855, %v1854
        %v1861 = vsel %vm519, %v1843, 0
        %1863 = vmatprep.subr.bf16.mxu0 0
        %1864 = vmatpush1.bf16.msra.mxu0 %v1856
        %1865 = vmatprep.subr.bf16.mxu0 0
        %1866 = vmatpush1.bf16.msra.mxu0 %v1857
        %1867 = vmatprep.subr.bf16.mxu0 0
        %1868 = vmatpush1.bf16.msra.mxu0 0
        %1869 = vmatprep.subr.bf16.mxu0 0
        %1870 = vmatpush1.bf16.msra.mxu0 0
        %1871 = vmatprep.subr.bf16.mxu0 0
        %1872 = vmatpush1.bf16.msra.mxu0 0
        %1873 = vmatprep.subr.bf16.mxu0 0
        %1874 = vmatpush1.bf16.msra.mxu0 0
        %1875 = vmatprep.subr.bf16.mxu0 0
        %1876 = vmatpush1.bf16.msra.mxu0 0
        %1877 = vmatprep.subr.bf16.mxu0 0
        %1878 = vmatpush1.bf16.msra.mxu0 0
        %1879 = vmatprep.subr.bf16.mxu0 0
        %1880 = vmatpush1.bf16.msra.mxu0 0
        %1881 = vmatprep.subr.bf16.mxu0 0
        %1882 = vmatpush1.bf16.msra.mxu0 0
        %1883 = vmatprep.subr.bf16.mxu0 0
        %1884 = vmatpush1.bf16.msra.mxu0 0
        %1885 = vmatprep.subr.bf16.mxu0 0
        %1886 = vmatpush1.bf16.msra.mxu0 0
        %1887 = vmatprep.subr.bf16.mxu0 0
        %1888 = vmatpush1.bf16.msra.mxu0 0
        %1889 = vmatprep.subr.bf16.mxu0 0
        %1890 = vmatpush1.bf16.msra.mxu0 0
        %1891 = vmatprep.subr.bf16.mxu0 0
        %1892 = vmatpush1.bf16.msra.mxu0 0
        %1893 = vmatprep.subr.bf16.mxu0 0
        %1894 = vmatpush1.bf16.msra.mxu0 0
        %1895 = vmatprep.mubr.bf16.mxu0 0
        %1896 = vmatmul.mubr.bf16.gmra.mrb[0].mxu0 %v1861
        %v1897 = vpop.f32.mrb[0].mxu0
        %v1898 = vadd.f32 0.0, %v1897
        %v1899 = vpop.f32.mrb[0].mxu0
        %v1900 = vpop.f32.mrb[0].mxu0
        %v1901 = vpop.f32.mrb[0].mxu0
        %1902 = vdwg.mxu0
        %v1903 = vmax.f32 %v1898, 0.0
        %v1904 = vpack.c.bf16 %v1903, %v1903
        %v1905 = vld [vmem:[%s8] sm:$0xf]
        %v1906 = vld [vmem:[%s8 + $0x4] sm:$0xf]
        %v1907 = vld [vmem:[%s8 + $0x8] sm:$0xf]
        %v1908 = vld [vmem:[%s8 + $0xc] sm:$0xf]
        %v1909 = vld [vmem:[%s8 + $0x10] sm:$0xf]
        %v1910 = vld [vmem:[%s8 + $0x14] sm:$0xf]
        %v1911 = vld [vmem:[%s8 + $0x18] sm:$0xf]
        %v1912 = vld [vmem:[%s8 + $0x1c] sm:$0xf]
        %v1921 = vunpack.c.l.b16 %v1905
        %v1922 = vunpack.c.l.b16 %v1906
        %v1923 = vunpack.c.l.b16 %v1907
        %v1924 = vunpack.c.l.b16 %v1908
        %v1925 = vunpack.c.l.b16 %v1909
        %v1926 = vunpack.c.l.b16 %v1910
        %v1927 = vunpack.c.l.b16 %v1911
        %v1928 = vunpack.c.l.b16 %v1912
        %v1929 = vpack.c.b16 %v1922, %v1921
        %v1930 = vpack.c.b16 %v1924, %v1923
        %v1931 = vpack.c.b16 %v1926, %v1925
        %v1932 = vpack.c.b16 %v1928, %v1927
        %vm1937 = vcmask 523264
        %v1939 = vsel %vm1937, %v1904, 0
        %1941 = vmatprep.subr.bf16.mxu0 0
        %1942 = vmatpush1.bf16.msra.mxu0 %v1929
        %1943 = vmatprep.subr.bf16.mxu0 0
        %1944 = vmatpush1.bf16.msra.mxu0 %v1930
        %1945 = vmatprep.subr.bf16.mxu0 0
        %1946 = vmatpush1.bf16.msra.mxu0 %v1931
        %1947 = vmatprep.subr.bf16.mxu0 0
        %1948 = vmatpush1.bf16.msra.mxu0 %v1932
        %1949 = vmatprep.subr.bf16.mxu0 0
        %1950 = vmatpush1.bf16.msra.mxu0 0
        %1951 = vmatprep.subr.bf16.mxu0 0
        %1952 = vmatpush1.bf16.msra.mxu0 0
        %1953 = vmatprep.subr.bf16.mxu0 0
        %1954 = vmatpush1.bf16.msra.mxu0 0
        %1955 = vmatprep.subr.bf16.mxu0 0
        %1956 = vmatpush1.bf16.msra.mxu0 0
        %1957 = vmatprep.subr.bf16.mxu0 0
        %1958 = vmatpush1.bf16.msra.mxu0 0
        %1959 = vmatprep.subr.bf16.mxu0 0
        %1960 = vmatpush1.bf16.msra.mxu0 0
        %1961 = vmatprep.subr.bf16.mxu0 0
        %1962 = vmatpush1.bf16.msra.mxu0 0
        %1963 = vmatprep.subr.bf16.mxu0 0
        %1964 = vmatpush1.bf16.msra.mxu0 0
        %1965 = vmatprep.subr.bf16.mxu0 0
        %1966 = vmatpush1.bf16.msra.mxu0 0
        %1967 = vmatprep.subr.bf16.mxu0 0
        %1968 = vmatpush1.bf16.msra.mxu0 0
        %1969 = vmatprep.subr.bf16.mxu0 0
        %1970 = vmatpush1.bf16.msra.mxu0 0
        %1971 = vmatprep.subr.bf16.mxu0 0
        %1972 = vmatpush1.bf16.msra.mxu0 0
        %1973 = vmatprep.mubr.bf16.mxu0 0
        %1974 = vmatmul.mubr.bf16.gmra.mrb[0].mxu0 %v1939
        %v1975 = vpop.f32.mrb[0].mxu0
        %v1976 = vadd.f32 0.0, %v1975
        %v1977 = vpop.f32.mrb[0].mxu0
        %v1978 = vpop.f32.mrb[0].mxu0
        %v1979 = vpop.f32.mrb[0].mxu0
        %1980 = vdwg.mxu0
        %v1981 = vadd.f32 %v1826, %v1976
        %1982 = vst.msk [vmem:[%s495] sm:$0xff] %vm519, %v1981
        %s1983 = sand.u32 %s303, 1
        %s1984 = scalar_lea.sflag [#allocation4], %s1983
        %s1985 = sand.u32 %s303, 1
        %s1986 = smul.addr %s1985, 8
        %s1987 = scalar_lea.vmem [#allocation10], %s1986
        // Predicated region
        $region81: #{tpu_custom_call.1} parent=63 // pred_check
          %p1988 = pneg %p313
        $region82: #{tpu_custom_call.1} parent=63 // pred_check_branch
          %1990 = sbr.rel (%p1988) target = $region84
        $region83: #{tpu_custom_call.1} parent=63 // pred_region
          %s1992 = ssub.s32 128, 128
          %1993 = vsyncadd %s1984, %s1992
          %s1994 = sadd.s32 %s33, %s32
          %s1995 = smul.addr %s1994, 128
          %s1996 = scalar_lea.hbm %s11, %s1995
          %s1998 = sshll.u32 %s1987, 4
          %s1999 = int_to_ptr.vmem [resolvable:$true] %s1998
          %2001 = dma.vmem_to_hbm [thread:$0]  %s1999, 128, %s1996, %s1984
        $region84: #{tpu_custom_call.1} parent=63 // pred_fallthru
          _
      $region64: #{tpu_custom_call.1} parent=5 // pred_fallthru
        _
      %p2002 = scmp.le.s32.totalorder 2, %s23
      // Predicated region
      $region85: #{tpu_custom_call.1} parent=5 // pred_check
        %p2003 = pneg %p2002
      $region86: #{tpu_custom_call.1} parent=5 // pred_check_branch
        %2005 = sbr.rel (%p2003) target = $region88
      $region87: #{tpu_custom_call.1} parent=5 // pred_region
        %s2006 = ssub.s32 %s23, 2
        // Predicated region
        $region89: #{tpu_custom_call.1} parent=87 // pred_check
          %p2007 = pneg %p319
        $region90: #{tpu_custom_call.1} parent=87 // pred_check_branch
          %2009 = sbr.rel (%p2007) target = $region92
        $region91: #{tpu_custom_call.1} parent=87 // pred_region
          %s2010 = sand.u32 %s304, 1
          %s2011 = scalar_lea.sflag [#allocation4], %s2010
          %s2012 = sand.u32 %s304, 1
          %s2013 = smul.addr %s2012, 8
          %s2014 = scalar_lea.vmem [#allocation10], %s2013
          %2015 = dma.done %s2011, 128
        $region92: #{tpu_custom_call.1} parent=87 // pred_fallthru
          _
      $region88: #{tpu_custom_call.1} parent=5 // pred_fallthru
        _
    $region6: #{tpu_custom_call.1} parent=1 // loop_footer
      %s27 = sadd.s32 1, %s23
    $region7: #{tpu_custom_call.1} parent=1 // loop_footer_branch
      %22 = sbr.rel target = $region3
    $region8: #{tpu_custom_call.1} parent=1 // loop_exit
      _
    %2016 = vsyncpa [#allocation3], 1
    %s2017 = scalar_lea.sflag [#allocation3], 1
    %2018 = vsyncpa %s2017, 1
    %2019 = vsyncpa [#allocation6], 1
    %2020 = vsyncpa [#allocation9], 1
    %2021 = vsyncpa [#allocation4], 1
    %s2022 = scalar_lea.sflag [#allocation4], 1
    %2023 = vsyncpa %s2022, 1

</llo_original>
